<compile_context>
chip_gen: v7x
topology: tpu7x:2x2x1
jax: 0.10.0
libtpu: 0.0.40
codegen_flags: <defaults>
</compile_context>

<pallas_src>
import jax
import jax.numpy as jnp
from jax import lax
from jax.experimental import pallas as pl
from jax.experimental.pallas import tpu as pltpu


def _round_up(x, m):
    return (x + m - 1) // m * m


def _conv3x3_kernel(x_ref, w_ref, b_ref, o_ref, patch_ref):
    # x_ref:     (1, H, W, Cin)  bf16  un-padded input tile for one batch elem
    # w_ref:     (Kp, Cp)        bf16  weight, row (dy*3+dx)*Cin + ci, zero-pad
    # b_ref:     (1, Cp)         f32   bias, zero-padded
    # o_ref:     (1, H*W, Cp)    f32   lane-dense output
    # patch_ref: (H, W, Kp)      bf16  VMEM im2col scratch
    _, H, W, Cin = x_ref.shape
    Kp = patch_ref.shape[-1]

    # Zero the scratch: supplies the padding=1 halo zeros and the K-pad lanes.
    # (Done every step so it is correct under megacore grid splitting.)
    patch_ref[...] = jnp.zeros_like(patch_ref)

    # im2col: column group (dy*3+dx)*Cin holds the (dy-1, dx-1)-shifted input.
    # All slices are static; halo positions stay zero.
    for dy in range(3):
        for dx in range(3):
            oy, ox = dy - 1, dx - 1
            h0, h1 = max(0, -oy), min(H, H - oy)
            w0, w1 = max(0, -ox), min(W, W - ox)
            c0 = (dy * 3 + dx) * Cin
            patch_ref[h0:h1, w0:w1, c0:c0 + Cin] = (
                x_ref[0, h0 + oy:h1 + oy, w0 + ox:w1 + ox, :])

    # Single big matmul on the MXU: (H*W, Kp) @ (Kp, Cp), f32 accumulation.
    patch = patch_ref[...].reshape(H * W, Kp)
    acc = jnp.dot(patch, w_ref[...], preferred_element_type=jnp.float32)
    o_ref[0] = acc + b_ref[...]


def intermediate_conv_block(x_nchw, weight_oihw, bias):
    """3x3 conv, padding=1, stride=1, with bias. Matches nn.Conv2d semantics.

    x_nchw:      (N, Cin, H, W)  float32
    weight_oihw: (Cout, Cin, 3, 3)
    bias:        (Cout,)
    returns:     (N, Cout, H, W) float32
    """
    N, Cin, H, W = x_nchw.shape
    Cout = weight_oihw.shape[0]
    Kp = _round_up(9 * Cin, 128)   # im2col contraction dim, lane-dense
    Cp = _round_up(Cout, 128)      # output channels, lane-dense

    # NCHW -> NHWC + bf16 cast (one fused XLA pass). No spatial padding here:
    # the halo is handled inside the kernel.
    x_nhwc = jnp.transpose(x_nchw, (0, 2, 3, 1)).astype(jnp.bfloat16)

    # OIHW -> (3,3,Cin,Cout) -> (9*Cin, Cout), zero-pad to (Kp, Cp), bf16.
    w_mat = jnp.transpose(weight_oihw, (2, 3, 1, 0)).reshape(9 * Cin, Cout)
    w_mat = jnp.pad(w_mat, ((0, Kp - 9 * Cin), (0, Cp - Cout)))
    w_mat = w_mat.astype(jnp.bfloat16)
    b_pad = jnp.pad(bias, (0, Cp - Cout)).astype(jnp.float32).reshape(1, Cp)

    out = pl.pallas_call(
        _conv3x3_kernel,
        out_shape=jax.ShapeDtypeStruct((N, H * W, Cp), jnp.float32),
        grid_spec=pltpu.PrefetchScalarGridSpec(
            num_scalar_prefetch=0,
            grid=(N,),
            in_specs=[
                pl.BlockSpec((1, H, W, Cin), lambda n: (n, 0, 0, 0)),
                pl.BlockSpec((Kp, Cp), lambda n: (0, 0)),
                pl.BlockSpec((1, Cp), lambda n: (0, 0)),
            ],
            out_specs=pl.BlockSpec((1, H * W, Cp), lambda n: (n, 0, 0)),
            scratch_shapes=[pltpu.VMEM((H, W, Kp), jnp.bfloat16)],
        ),
        compiler_params=pltpu.CompilerParams(
            dimension_semantics=("parallel",),
            vmem_limit_bytes=32 * 1024 * 1024,
        ),
    )(x_nhwc, w_mat, b_pad)

    # Strip channel padding, restore NCHW (fused slice+reshape+transpose).
    out = out[:, :, :Cout].reshape(N, H, W, Cout)
    return jnp.transpose(out, (0, 3, 1, 2))


def _init_params(key, in_ch, out_ch):
    # Deterministic synthetic init mirroring nn.Conv2d + kaiming_normal_.
    kw, kb = jax.random.split(key)
    fan_in = in_ch * 3 * 3
    std = (2.0 / fan_in) ** 0.5  # kaiming_normal_, mode='fan_in', relu gain
    weight = std * jax.random.normal(kw, (out_ch, in_ch, 3, 3), jnp.float32)
    bound = 1.0 / (fan_in ** 0.5)  # PyTorch default conv bias init
    bias = jax.random.uniform(kb, (out_ch,), jnp.float32, -bound, bound)
    return weight, bias


if __name__ == "__main__":
    key = jax.random.PRNGKey(0)
    k_x, k_p = jax.random.split(key)

    N, Cin, H, W = 2, 4, 16, 16
    Cout = 8

    x = jax.random.normal(k_x, (N, Cin, H, W), jnp.float32)
    weight, bias = _init_params(k_p, Cin, Cout)

    out = intermediate_conv_block(x, weight, bias)
    out = jax.block_until_ready(out)

    # Reference check with XLA's f32 conv (same NCHW/OIHW semantics as PyTorch).
    ref = lax.conv_general_dilated(
        x, weight, window_strides=(1, 1), padding=((1, 1), (1, 1)),
        dimension_numbers=("NCHW", "OIHW", "NCHW"))
    ref = ref + bias[None, :, None, None]

    assert out.shape == (N, Cout, H, W)
    # Tolerance derived for bf16 MXU inputs with f32 accumulation over K=36:
    # typical abs error ~1e-3, worst-case tail well under 3e-2.
    assert jnp.allclose(out, ref, atol=3e-2, rtol=3e-2), (
        float(jnp.max(jnp.abs(out - ref))))
    print("KERNEL_OK")
</pallas_src>

<mosaic_0001>
module attributes {stable_mosaic.version = 11 : i64} {
  func.func @_conv3x3_kernel(%arg0: i32, %arg1: memref<1x16x16x4xbf16, #tpu.memory_space<vmem>>, %arg2: memref<128x128xbf16, #tpu.memory_space<vmem>>, %arg3: memref<1x128xf32, #tpu.memory_space<vmem>>, %arg4: memref<1x256x128xf32, #tpu.memory_space<vmem>>, %arg5: memref<16x16x128xbf16, #tpu.memory_space<vmem>>) attributes {dimension_semantics = [#tpu.dimension_semantics<parallel>], iteration_bounds = array<i64: 2>, scalar_prefetch = 0 : i64, scratch_operands = 1 : i64, tpu.core_type = #tpu.core_type<tc>, window_params = [{transform_indices = @transform_0, window_bounds = array<i64: 1, 16, 16, 4>}, {pipeline_mode = #tpu.pipeline_mode<synchronous>, transform_indices = @transform_1, window_bounds = array<i64: 128, 128>}, {pipeline_mode = #tpu.pipeline_mode<synchronous>, transform_indices = @transform_2, window_bounds = array<i64: 1, 128>}, {transform_indices = @transform_3, window_bounds = array<i64: 1, 256, 128>}]} {
    %cst = arith.constant 0.000000e+00 : bf16
    %0 = vector.broadcast %cst : bf16 to vector<16x16x128xbf16>
    %c0 = arith.constant 0 : index
    %c0_0 = arith.constant 0 : index
    %c0_1 = arith.constant 0 : index
    %1 = vector.load %arg5[%c0, %c0_0, %c0_1] : memref<16x16x128xbf16, #tpu.memory_space<vmem>>, vector<16x16x128xbf16>
    tpu.vector_store %arg5[%c0, %c0_0, %c0_1], %0 {strides = array<i32>} : memref<16x16x128xbf16, #tpu.memory_space<vmem>>, vector<16x16x128xbf16>,
    %c0_2 = arith.constant 0 : index
    %c0_3 = arith.constant 0 : index
    %c0_4 = arith.constant 0 : index
    %c0_5 = arith.constant 0 : index
    %2 = vector.load %arg1[%c0_2, %c0_3, %c0_4, %c0_5] : memref<1x16x16x4xbf16, #tpu.memory_space<vmem>>, vector<1x15x15x4xbf16>
    %3 = vector.shape_cast %2 : vector<1x15x15x4xbf16> to vector<15x15x4xbf16>
    %c1 = arith.constant 1 : index
    %c1_6 = arith.constant 1 : index
    %c0_7 = arith.constant 0 : index
    %4 = vector.load %arg5[%c1, %c1_6, %c0_7] : memref<16x16x128xbf16, #tpu.memory_space<vmem>>, vector<15x15x4xbf16>
    tpu.vector_store %arg5[%c1, %c1_6, %c0_7], %3 {strides = array<i32>} : memref<16x16x128xbf16, #tpu.memory_space<vmem>>, vector<15x15x4xbf16>,
    %c0_8 = arith.constant 0 : index
    %c0_9 = arith.constant 0 : index
    %c0_10 = arith.constant 0 : index
    %c0_11 = arith.constant 0 : index
    %5 = vector.load %arg1[%c0_8, %c0_9, %c0_10, %c0_11] : memref<1x16x16x4xbf16, #tpu.memory_space<vmem>>, vector<1x15x16x4xbf16>
    %6 = vector.shape_cast %5 : vector<1x15x16x4xbf16> to vector<15x16x4xbf16>
    %c1_12 = arith.constant 1 : index
    %c0_13 = arith.constant 0 : index
    %c4 = arith.constant 4 : index
    %7 = vector.load %arg5[%c1_12, %c0_13, %c4] : memref<16x16x128xbf16, #tpu.memory_space<vmem>>, vector<15x16x4xbf16>
    tpu.vector_store %arg5[%c1_12, %c0_13, %c4], %6 {strides = array<i32>} : memref<16x16x128xbf16, #tpu.memory_space<vmem>>, vector<15x16x4xbf16>,
    %c0_14 = arith.constant 0 : index
    %c0_15 = arith.constant 0 : index
    %c1_16 = arith.constant 1 : index
    %c0_17 = arith.constant 0 : index
    %8 = vector.load %arg1[%c0_14, %c0_15, %c1_16, %c0_17] : memref<1x16x16x4xbf16, #tpu.memory_space<vmem>>, vector<1x15x15x4xbf16>
    %9 = vector.shape_cast %8 : vector<1x15x15x4xbf16> to vector<15x15x4xbf16>
    %c1_18 = arith.constant 1 : index
    %c0_19 = arith.constant 0 : index
    %c8 = arith.constant 8 : index
    %10 = vector.load %arg5[%c1_18, %c0_19, %c8] : memref<16x16x128xbf16, #tpu.memory_space<vmem>>, vector<15x15x4xbf16>
    tpu.vector_store %arg5[%c1_18, %c0_19, %c8], %9 {strides = array<i32>} : memref<16x16x128xbf16, #tpu.memory_space<vmem>>, vector<15x15x4xbf16>,
    %c0_20 = arith.constant 0 : index
    %c0_21 = arith.constant 0 : index
    %c0_22 = arith.constant 0 : index
    %c0_23 = arith.constant 0 : index
    %11 = vector.load %arg1[%c0_20, %c0_21, %c0_22, %c0_23] : memref<1x16x16x4xbf16, #tpu.memory_space<vmem>>, vector<1x16x15x4xbf16>
    %12 = vector.shape_cast %11 : vector<1x16x15x4xbf16> to vector<16x15x4xbf16>
    %c0_24 = arith.constant 0 : index
    %c1_25 = arith.constant 1 : index
    %c12 = arith.constant 12 : index
    %13 = vector.load %arg5[%c0_24, %c1_25, %c12] : memref<16x16x128xbf16, #tpu.memory_space<vmem>>, vector<16x15x4xbf16>
    tpu.vector_store %arg5[%c0_24, %c1_25, %c12], %12 {strides = array<i32>} : memref<16x16x128xbf16, #tpu.memory_space<vmem>>, vector<16x15x4xbf16>,
    %c0_26 = arith.constant 0 : index
    %c0_27 = arith.constant 0 : index
    %c0_28 = arith.constant 0 : index
    %c0_29 = arith.constant 0 : index
    %14 = vector.load %arg1[%c0_26, %c0_27, %c0_28, %c0_29] : memref<1x16x16x4xbf16, #tpu.memory_space<vmem>>, vector<1x16x16x4xbf16>
    %15 = vector.shape_cast %14 : vector<1x16x16x4xbf16> to vector<16x16x4xbf16>
    %c0_30 = arith.constant 0 : index
    %c0_31 = arith.constant 0 : index
    %c16 = arith.constant 16 : index
    %16 = vector.load %arg5[%c0_30, %c0_31, %c16] : memref<16x16x128xbf16, #tpu.memory_space<vmem>>, vector<16x16x4xbf16>
    tpu.vector_store %arg5[%c0_30, %c0_31, %c16], %15 {strides = array<i32>} : memref<16x16x128xbf16, #tpu.memory_space<vmem>>, vector<16x16x4xbf16>,
    %c0_32 = arith.constant 0 : index
    %c0_33 = arith.constant 0 : index
    %c1_34 = arith.constant 1 : index
    %c0_35 = arith.constant 0 : index
    %17 = vector.load %arg1[%c0_32, %c0_33, %c1_34, %c0_35] : memref<1x16x16x4xbf16, #tpu.memory_space<vmem>>, vector<1x16x15x4xbf16>
    %18 = vector.shape_cast %17 : vector<1x16x15x4xbf16> to vector<16x15x4xbf16>
    %c0_36 = arith.constant 0 : index
    %c0_37 = arith.constant 0 : index
    %c20 = arith.constant 20 : index
    %19 = vector.load %arg5[%c0_36, %c0_37, %c20] : memref<16x16x128xbf16, #tpu.memory_space<vmem>>, vector<16x15x4xbf16>
    tpu.vector_store %arg5[%c0_36, %c0_37, %c20], %18 {strides = array<i32>} : memref<16x16x128xbf16, #tpu.memory_space<vmem>>, vector<16x15x4xbf16>,
    %c0_38 = arith.constant 0 : index
    %c1_39 = arith.constant 1 : index
    %c0_40 = arith.constant 0 : index
    %c0_41 = arith.constant 0 : index
    %20 = vector.load %arg1[%c0_38, %c1_39, %c0_40, %c0_41] : memref<1x16x16x4xbf16, #tpu.memory_space<vmem>>, vector<1x15x15x4xbf16>
    %21 = vector.shape_cast %20 : vector<1x15x15x4xbf16> to vector<15x15x4xbf16>
    %c0_42 = arith.constant 0 : index
    %c1_43 = arith.constant 1 : index
    %c24 = arith.constant 24 : index
    %22 = vector.load %arg5[%c0_42, %c1_43, %c24] : memref<16x16x128xbf16, #tpu.memory_space<vmem>>, vector<15x15x4xbf16>
    tpu.vector_store %arg5[%c0_42, %c1_43, %c24], %21 {strides = array<i32>} : memref<16x16x128xbf16, #tpu.memory_space<vmem>>, vector<15x15x4xbf16>,
    %c0_44 = arith.constant 0 : index
    %c1_45 = arith.constant 1 : index
    %c0_46 = arith.constant 0 : index
    %c0_47 = arith.constant 0 : index
    %23 = vector.load %arg1[%c0_44, %c1_45, %c0_46, %c0_47] : memref<1x16x16x4xbf16, #tpu.memory_space<vmem>>, vector<1x15x16x4xbf16>
    %24 = vector.shape_cast %23 : vector<1x15x16x4xbf16> to vector<15x16x4xbf16>
    %c0_48 = arith.constant 0 : index
    %c0_49 = arith.constant 0 : index
    %c28 = arith.constant 28 : index
    %25 = vector.load %arg5[%c0_48, %c0_49, %c28] : memref<16x16x128xbf16, #tpu.memory_space<vmem>>, vector<15x16x4xbf16>
    tpu.vector_store %arg5[%c0_48, %c0_49, %c28], %24 {strides = array<i32>} : memref<16x16x128xbf16, #tpu.memory_space<vmem>>, vector<15x16x4xbf16>,
    %c0_50 = arith.constant 0 : index
    %c1_51 = arith.constant 1 : index
    %c1_52 = arith.constant 1 : index
    %c0_53 = arith.constant 0 : index
    %26 = vector.load %arg1[%c0_50, %c1_51, %c1_52, %c0_53] : memref<1x16x16x4xbf16, #tpu.memory_space<vmem>>, vector<1x15x15x4xbf16>
    %27 = vector.shape_cast %26 : vector<1x15x15x4xbf16> to vector<15x15x4xbf16>
    %c0_54 = arith.constant 0 : index
    %c0_55 = arith.constant 0 : index
    %c32 = arith.constant 32 : index
    %28 = vector.load %arg5[%c0_54, %c0_55, %c32] : memref<16x16x128xbf16, #tpu.memory_space<vmem>>, vector<15x15x4xbf16>
    tpu.vector_store %arg5[%c0_54, %c0_55, %c32], %27 {strides = array<i32>} : memref<16x16x128xbf16, #tpu.memory_space<vmem>>, vector<15x15x4xbf16>,
    %c0_56 = arith.constant 0 : index
    %c0_57 = arith.constant 0 : index
    %c0_58 = arith.constant 0 : index
    %29 = vector.load %arg5[%c0_56, %c0_57, %c0_58] : memref<16x16x128xbf16, #tpu.memory_space<vmem>>, vector<16x16x128xbf16>
    %30 = vector.shape_cast %29 : vector<16x16x128xbf16> to vector<256x128xbf16>
    %c0_59 = arith.constant 0 : index
    %c0_60 = arith.constant 0 : index
    %31 = vector.load %arg2[%c0_59, %c0_60] : memref<128x128xbf16, #tpu.memory_space<vmem>>, vector<128x128xbf16>
    %cst_61 = arith.constant dense<0.000000e+00> : vector<256x128xf32>
    %32 = tpu.matmul %30, %31, %cst_61 {dimension_numbers = #tpu.dot_dimension_numbers<[1], [0], [0], [1], [0, 0, 1, 1], [], []>} : vector<256x128xbf16>, vector<128x128xbf16>, vector<256x128xf32> -> vector<256x128xf32>
    %c0_62 = arith.constant 0 : index
    %c0_63 = arith.constant 0 : index
    %33 = vector.load %arg3[%c0_62, %c0_63] : memref<1x128xf32, #tpu.memory_space<vmem>>, vector<1x128xf32>
    %34 = vector.broadcast %33 : vector<1x128xf32> to vector<256x128xf32>
    %35 = arith.addf %32, %34 : vector<256x128xf32>
    %c0_64 = arith.constant 0 : index
    %c0_65 = arith.constant 0 : index
    %c0_66 = arith.constant 0 : index
    %36 = vector.load %arg4[%c0_64, %c0_65, %c0_66] : memref<1x256x128xf32, #tpu.memory_space<vmem>>, vector<1x256x128xf32>
    %37 = vector.shape_cast %36 : vector<1x256x128xf32> to vector<256x128xf32>
    %38 = vector.shape_cast %35 : vector<256x128xf32> to vector<1x256x128xf32>
    tpu.vector_store %arg4[%c0_64, %c0_65, %c0_66], %38 {strides = array<i32>} : memref<1x256x128xf32, #tpu.memory_space<vmem>>, vector<1x256x128xf32>,
    return
  }
  func.func @transform_0(%arg0: i32) -> (i32, i32, i32, i32) {
    %c0_i32 = arith.constant 0 : i32
    %c0_i32_0 = arith.constant 0 : i32
    %c0_i32_1 = arith.constant 0 : i32
    %c0_i32_2 = arith.constant 0 : i32
    return %arg0, %c0_i32, %c0_i32_0, %c0_i32_1 : i32, i32, i32, i32
  }
  func.func @transform_1(%arg0: i32) -> (i32, i32) {
    %c0_i32 = arith.constant 0 : i32
    %c0_i32_0 = arith.constant 0 : i32
    %c0_i32_1 = arith.constant 0 : i32
    return %c0_i32, %c0_i32_0 : i32, i32
  }
  func.func @transform_2(%arg0: i32) -> (i32, i32) {
    %c0_i32 = arith.constant 0 : i32
    %c0_i32_0 = arith.constant 0 : i32
    %c0_i32_1 = arith.constant 0 : i32
    return %c0_i32, %c0_i32_0 : i32, i32
  }
  func.func @transform_3(%arg0: i32) -> (i32, i32, i32) {
    %c0_i32 = arith.constant 0 : i32
    %c0_i32_0 = arith.constant 0 : i32
    %c0_i32_1 = arith.constant 0 : i32
    return %arg0, %c0_i32, %c0_i32_0 : i32, i32, i32
  }
}

</mosaic_0001>

<llo_original>
// kernel: tpu_custom_call.1
$region0: #{tpu_custom_call.1}
  #allocation0 [shape = 'u32[]', space=smem, size = 0x4, offset = 0x4, fixed_abs, tag = 'smem constant byte address 0x4 - core index']
  #allocation1 [shape = 'u32[144,128]{1,0:T(1,128)}', space=vmem, size = 0x12000, scoped, tag = 'internal scratch']
  #allocation2 [shape = 'bf16[16,16,128]{2,1,0:T(16,128)(2,1)}', space=vmem, size = 0x10000, scoped, tag = 'scratch operand']
  %s0 = inlined_call_operand.vmem [shape: bf16[2,16,16,4], index: 0, kind: input, shape index: {}]
  %s1 = inlined_call_operand.vmem [shape: bf16[128,128], index: 1, kind: input, shape index: {}]
  %s2 = inlined_call_operand.vmem [shape: f32[1,128], index: 2, kind: input, shape index: {}]
  %s3 = inlined_call_operand.hbm [shape: f32[2,256,128], index: 3, kind: output, shape index: {}]
  %s4 = sld [smem:[#allocation0]]
  $region45: #{tpu_custom_call.1} parent=0
    _
  %s6 = ssub.s32 1, %s4
  %s7 = scalar_select 0, %s6, %s4
  $region1: #{tpu_custom_call.1} parent=0
    #allocation3 [shape = 'u8[262144]{0}', space=vmem, size = 0x40000, scoped, tag = 'output window, operand 0']
    #allocation4 [shape = 's32[2]{0}', space=sflag, size = 0x8, scoped, tag = 'scoped memory for tpu_custom_call.1']
    %8 = vsyncpa [#allocation4], 0
    %s9 = scalar_lea.sflag [#allocation4], 1
    %10 = vsyncpa %s9, 0
    loop: start=0, step=1, limit=4
    $region2: #{tpu_custom_call.1} parent=1 // loop_pre_header
      _
    $region3: #{tpu_custom_call.1} parent=1 // loop_header
      %s12 = sphi 0, %s16
      %p13 = scmp.ge.s32.totalorder %s12, 4
      %s22 = sphi 0, %s24
      %s25 = sphi 0, %s22
      %s26 = sphi 0, %s25
      %s42 = sphi 0, %s26
      %s46 = sphi 0, %s46
      %s48 = sphi 0, %s46
      %s49 = sphi 0, %s48
      %s63 = sphi 0, %s49
      %s67 = sphi 0, %s67
      %s69 = sphi 0, %s67
      %s70 = sphi 0, %s69
      %s84 = sphi 0, %s70
      %s90 = sphi 0, %s92
      %s93 = sphi 0, %s90
      %s94 = sphi 0, %s93
      %s110 = sphi 0, %s94
    $region4: #{tpu_custom_call.1} parent=1 // loop_header_branch
      %15 = sbr.rel (%p13) target = $region8
    $region5: #{tpu_custom_call.1} parent=1 // loop_body
      %s17 = ssub.s32 %s12, 1
      %s18 = ssub.s32 %s12, 2
      %s19 = sadd.s32 %s12, 1
      %s20 = ssub.s32 %s12, %s19
      %p21 = scmp.eq.s32.totalorder %s20, 0
      %s23 = sadd.s32 %s22, 1
      %s24 = scalar_select %p21, %s22, %s23
      %p27 = pneg %p21
      %p28 = scmp.eq.s32.totalorder %s12, 1
      %p29 = por %p27, %p28
      %p30 = scmp.ne.s32.totalorder %s22, %s25
      %p31 = scmp.eq.s32.totalorder %s12, 0
      %p32 = por %p30, %p31
      %p33 = scmp.ne.s32.totalorder %s22, %s25
      %p34 = scmp.eq.s32.totalorder %s17, 1
      %p35 = por %p33, %p34
      %p36 = scmp.ne.s32.totalorder %s25, %s26
      %p37 = scmp.eq.s32.totalorder %s17, 0
      %p38 = por %p36, %p37
      %p39 = scmp.ne.s32.totalorder %s25, %s26
      %p40 = scmp.eq.s32.totalorder %s18, 1
      %p41 = por %p39, %p40
      %p43 = scmp.ne.s32.totalorder %s26, %s42
      %p44 = scmp.eq.s32.totalorder %s18, 0
      %p45 = por %p43, %p44
      %s47 = sadd.s32 %s46, 1
      %p50 = scmp.eq.s32.totalorder %s12, 1
      %p51 = scmp.ne.s32.totalorder %s46, %s48
      %p52 = scmp.eq.s32.totalorder %s12, 0
      %p53 = por %p51, %p52
      %p54 = scmp.ne.s32.totalorder %s46, %s48
      %p55 = scmp.eq.s32.totalorder %s17, 1
      %p56 = por %p54, %p55
      %p57 = scmp.ne.s32.totalorder %s48, %s49
      %p58 = scmp.eq.s32.totalorder %s17, 0
      %p59 = por %p57, %p58
      %p60 = scmp.ne.s32.totalorder %s48, %s49
      %p61 = scmp.eq.s32.totalorder %s18, 1
      %p62 = por %p60, %p61
      %p64 = scmp.ne.s32.totalorder %s49, %s63
      %p65 = scmp.eq.s32.totalorder %s18, 0
      %p66 = por %p64, %p65
      %s68 = sadd.s32 %s67, 1
      %p71 = scmp.eq.s32.totalorder %s12, 1
      %p72 = scmp.ne.s32.totalorder %s67, %s69
      %p73 = scmp.eq.s32.totalorder %s12, 0
      %p74 = por %p72, %p73
      %p75 = scmp.ne.s32.totalorder %s67, %s69
      %p76 = scmp.eq.s32.totalorder %s17, 1
      %p77 = por %p75, %p76
      %p78 = scmp.ne.s32.totalorder %s69, %s70
      %p79 = scmp.eq.s32.totalorder %s17, 0
      %p80 = por %p78, %p79
      %p81 = scmp.ne.s32.totalorder %s69, %s70
      %p82 = scmp.eq.s32.totalorder %s18, 1
      %p83 = por %p81, %p82
      %p85 = scmp.ne.s32.totalorder %s70, %s84
      %p86 = scmp.eq.s32.totalorder %s18, 0
      %p87 = por %p85, %p86
      %s88 = ssub.s32 %s12, %s19
      %p89 = scmp.eq.s32.totalorder %s88, 0
      %s91 = sadd.s32 %s90, 1
      %s92 = scalar_select %p89, %s90, %s91
      %p95 = pneg %p89
      %p96 = scmp.eq.s32.totalorder %s12, 1
      %p97 = por %p95, %p96
      %p98 = scmp.ne.s32.totalorder %s90, %s93
      %p99 = scmp.eq.s32.totalorder %s12, 0
      %p100 = por %p98, %p99
      %p101 = scmp.ne.s32.totalorder %s90, %s93
      %p102 = scmp.eq.s32.totalorder %s17, 1
      %p103 = por %p101, %p102
      %p104 = scmp.ne.s32.totalorder %s93, %s94
      %p105 = scmp.eq.s32.totalorder %s17, 0
      %p106 = por %p104, %p105
      %p107 = scmp.ne.s32.totalorder %s93, %s94
      %p108 = scmp.eq.s32.totalorder %s18, 1
      %p109 = por %p107, %p108
      %p111 = scmp.ne.s32.totalorder %s94, %s110
      %p112 = scmp.eq.s32.totalorder %s18, 0
      %p113 = por %p111, %p112
      %p114 = scmp.le.s32.totalorder 1, %s12
      %p115 = scmp.lt.s32.totalorder %s12, 3
      %p116 = pnand %p114, %p115
      %p117 = pneg %p116
      // Predicated region
      $region9: #{tpu_custom_call.1} parent=5 // pred_check
        _
      $region10: #{tpu_custom_call.1} parent=5 // pred_check_branch
        %119 = sbr.rel (%p116) target = $region12
      $region11: #{tpu_custom_call.1} parent=5 // pred_region
        %s120 = ssub.s32 %s12, 1
        // Predicated region
        $region13: #{tpu_custom_call.1} parent=11 // pred_check
          %p121 = pneg %p59
        $region14: #{tpu_custom_call.1} parent=11 // pred_check_branch
          %123 = sbr.rel (%p121) target = $region16
        $region15: #{tpu_custom_call.1} parent=11 // pred_region
          _
        $region16: #{tpu_custom_call.1} parent=11 // pred_fallthru
          _
        // Predicated region
        $region17: #{tpu_custom_call.1} parent=11 // pred_check
          %p124 = pneg %p80
        $region18: #{tpu_custom_call.1} parent=11 // pred_check_branch
          %126 = sbr.rel (%p124) target = $region20
        $region19: #{tpu_custom_call.1} parent=11 // pred_region
          _
        $region20: #{tpu_custom_call.1} parent=11 // pred_fallthru
          _
      $region12: #{tpu_custom_call.1} parent=5 // pred_fallthru
        _
      %p127 = scmp.lt.s32.totalorder %s12, 2
      // Predicated region
      $region21: #{tpu_custom_call.1} parent=5 // pred_check
        %p128 = pneg %p127
      $region22: #{tpu_custom_call.1} parent=5 // pred_check_branch
        %130 = sbr.rel (%p128) target = $region24
      $region23: #{tpu_custom_call.1} parent=5 // pred_region
        // Predicated region
        $region25: #{tpu_custom_call.1} parent=23 // pred_check
          %p131 = pneg %p32
        $region26: #{tpu_custom_call.1} parent=23 // pred_check_branch
          %133 = sbr.rel (%p131) target = $region28
        $region27: #{tpu_custom_call.1} parent=23 // pred_region
          %p134 = scmp.lt.s32.totalorder %s12, 1
          %s135 = scalar_select %p134, %s12, 1
          %s136 = smul.addr %s135, 32
          %s137 = smul.addr %s136, 4
          %s138 = scalar_lea.vmem %s0, %s137
        $region28: #{tpu_custom_call.1} parent=23 // pred_fallthru
          _
      $region24: #{tpu_custom_call.1} parent=5 // pred_fallthru
        _
      %p139 = scmp.le.s32.totalorder 1, %s12
      %p140 = scmp.lt.s32.totalorder %s12, 3
      %p141 = pnand %p139, %p140
      %p142 = pneg %p141
      // Predicated region
      $region29: #{tpu_custom_call.1} parent=5 // pred_check
        _
      $region30: #{tpu_custom_call.1} parent=5 // pred_check_branch
        %144 = sbr.rel (%p141) target = $region32
      $region31: #{tpu_custom_call.1} parent=5 // pred_region
        %s145 = ssub.s32 %s12, 1
        %p146 = scmp.lt.s32.totalorder %s17, 1
        %s147 = scalar_select %p146, %s17, 1
        %s148 = smul.addr %s147, 32
        %s149 = smul.addr %s148, 4
        %s150 = scalar_lea.vmem %s0, %s149
        %p151 = pneg %p38
        %p152 = pneg %p35
        %p153 = pneg %p59
        %p154 = pneg %p56
        %p155 = pneg %p80
        %p156 = pneg %p77
        %p157 = pneg %p106
        %p158 = pneg %p103
        %s159 = sand.u32 %s93, 1
        %s160 = scalar_lea.sflag [#allocation4], %s159
        %s161 = sand.u32 %s93, 1
        %s162 = smul.addr %s161, 256
        %s163 = scalar_lea.vmem [#allocation3], %s162
        %p164 = scmp.lt.s32.totalorder %s17, 1
        %s165 = scalar_select %p164, %s17, 1
        %s166 = smul.addr %s165, 32
        %s167 = smul.addr %s166, 4
        %s168 = scalar_lea.vmem %s0, %s167
        %170 = vst [vmem:[#allocation2] sm:$0xff] 0
        %171 = vst [vmem:[#allocation2 + $0x8] sm:$0xff] 0
        %172 = vst [vmem:[#allocation2 + $0x10] sm:$0xff] 0
        %173 = vst [vmem:[#allocation2 + $0x18] sm:$0xff] 0
        %174 = vst [vmem:[#allocation2 + $0x20] sm:$0xff] 0
        %175 = vst [vmem:[#allocation2 + $0x28] sm:$0xff] 0
        %176 = vst [vmem:[#allocation2 + $0x30] sm:$0xff] 0
        %177 = vst [vmem:[#allocation2 + $0x38] sm:$0xff] 0
        %178 = vst [vmem:[#allocation2 + $0x40] sm:$0xff] 0
        %179 = vst [vmem:[#allocation2 + $0x48] sm:$0xff] 0
        %180 = vst [vmem:[#allocation2 + $0x50] sm:$0xff] 0
        %181 = vst [vmem:[#allocation2 + $0x58] sm:$0xff] 0
        %182 = vst [vmem:[#allocation2 + $0x60] sm:$0xff] 0
        %183 = vst [vmem:[#allocation2 + $0x68] sm:$0xff] 0
        %184 = vst [vmem:[#allocation2 + $0x70] sm:$0xff] 0
        %185 = vst [vmem:[#allocation2 + $0x78] sm:$0xff] 0
        %v186 = vld [vmem:[%s168] sm:$0xf]
        %v187 = vld [vmem:[%s168 + $0x4] sm:$0xf]
        %v188 = vld [vmem:[%s168 + $0x8] sm:$0xf]
        %v189 = vld [vmem:[%s168 + $0xc] sm:$0xf]
        %v190 = vld [vmem:[%s168 + $0x10] sm:$0xf]
        %v191 = vld [vmem:[%s168 + $0x14] sm:$0xf]
        %v192 = vld [vmem:[%s168 + $0x18] sm:$0xf]
        %v193 = vld [vmem:[%s168 + $0x1c] sm:$0xf]
        %v194 = vld [vmem:[%s168 + $0x20] sm:$0xf]
        %v195 = vld [vmem:[%s168 + $0x24] sm:$0xf]
        %v196 = vld [vmem:[%s168 + $0x28] sm:$0xf]
        %v197 = vld [vmem:[%s168 + $0x2c] sm:$0xf]
        %v198 = vld [vmem:[%s168 + $0x30] sm:$0xf]
        %v199 = vld [vmem:[%s168 + $0x34] sm:$0xf]
        %v200 = vld [vmem:[%s168 + $0x38] sm:$0xf]
        %v201 = vld [vmem:[%s168 + $0x3c] sm:$0xf]
        %v202 = vld [vmem:[%s168 + $0x40] sm:$0xf]
        %v203 = vld [vmem:[%s168 + $0x44] sm:$0xf]
        %v204 = vld [vmem:[%s168 + $0x48] sm:$0xf]
        %v205 = vld [vmem:[%s168 + $0x4c] sm:$0xf]
        %v206 = vld [vmem:[%s168 + $0x50] sm:$0xf]
        %v207 = vld [vmem:[%s168 + $0x54] sm:$0xf]
        %v208 = vld [vmem:[%s168 + $0x58] sm:$0xf]
        %v209 = vld [vmem:[%s168 + $0x5c] sm:$0xf]
        %v210 = vld [vmem:[%s168 + $0x60] sm:$0xf]
        %v211 = vld [vmem:[%s168 + $0x64] sm:$0xf]
        %v212 = vld [vmem:[%s168 + $0x68] sm:$0xf]
        %v213 = vld [vmem:[%s168 + $0x6c] sm:$0xf]
        %v214 = vld [vmem:[%s168 + $0x70] sm:$0xf]
        %v215 = vld [vmem:[%s168 + $0x74] sm:$0xf]
        %v246 = vunpack.c.l.b16 %v186
        %v247 = vunpack.c.l.b16 %v187
        %v248 = vunpack.c.l.b16 %v188
        %v249 = vunpack.c.l.b16 %v189
        %v250 = vunpack.c.l.b16 %v190
        %v251 = vunpack.c.l.b16 %v191
        %v252 = vunpack.c.l.b16 %v192
        %v253 = vunpack.c.l.b16 %v193
        %v254 = vunpack.c.l.b16 %v194
        %v255 = vunpack.c.l.b16 %v195
        %v256 = vunpack.c.l.b16 %v196
        %v257 = vunpack.c.l.b16 %v197
        %v258 = vunpack.c.l.b16 %v198
        %v259 = vunpack.c.l.b16 %v199
        %v260 = vunpack.c.l.b16 %v200
        %v261 = vunpack.c.l.b16 %v201
        %v262 = vunpack.c.l.b16 %v202
        %v263 = vunpack.c.l.b16 %v203
        %v264 = vunpack.c.l.b16 %v204
        %v265 = vunpack.c.l.b16 %v205
        %v266 = vunpack.c.l.b16 %v206
        %v267 = vunpack.c.l.b16 %v207
        %v268 = vunpack.c.l.b16 %v208
        %v269 = vunpack.c.l.b16 %v209
        %v270 = vunpack.c.l.b16 %v210
        %v271 = vunpack.c.l.b16 %v211
        %v272 = vunpack.c.l.b16 %v212
        %v273 = vunpack.c.l.b16 %v213
        %v274 = vunpack.c.l.b16 %v214
        %v275 = vunpack.c.l.b16 %v215
        %v276 = vpack.c.b16 %v247, %v246
        %v277 = vpack.c.b16 %v249, %v248
        %v278 = vpack.c.b16 %v251, %v250
        %v279 = vpack.c.b16 %v253, %v252
        %v280 = vpack.c.b16 %v255, %v254
        %v281 = vpack.c.b16 %v257, %v256
        %v282 = vpack.c.b16 %v259, %v258
        %v283 = vpack.c.b16 %v261, %v260
        %v284 = vpack.c.b16 %v263, %v262
        %v285 = vpack.c.b16 %v265, %v264
        %v286 = vpack.c.b16 %v267, %v266
        %v287 = vpack.c.b16 %v269, %v268
        %v288 = vpack.c.b16 %v271, %v270
        %v289 = vpack.c.b16 %v273, %v272
        %v290 = vpack.c.b16 %v275, %v274
        %v292 = vshrl.u32 %v276, 16
        %v294 = vrot.slane %v292, 7
        %v295 = vshll.u32 %v276, 16
        %v297 = vor.u32 %v294, %v295
        %v299 = vshrl.u32 %v277, 16
        %v301 = vrot.slane %v299, 7
        %v302 = vshll.u32 %v277, 16
        %v304 = vor.u32 %v301, %v302
        %v306 = vshrl.u32 %v278, 16
        %v308 = vrot.slane %v306, 7
        %v309 = vshll.u32 %v278, 16
        %v311 = vor.u32 %v308, %v309
        %v313 = vshrl.u32 %v279, 16
        %v315 = vrot.slane %v313, 7
        %v316 = vshll.u32 %v279, 16
        %v318 = vor.u32 %v315, %v316
        %v320 = vshrl.u32 %v280, 16
        %v322 = vrot.slane %v320, 7
        %v323 = vshll.u32 %v280, 16
        %v325 = vor.u32 %v322, %v323
        %v327 = vshrl.u32 %v281, 16
        %v329 = vrot.slane %v327, 7
        %v330 = vshll.u32 %v281, 16
        %v332 = vor.u32 %v329, %v330
        %v334 = vshrl.u32 %v282, 16
        %v336 = vrot.slane %v334, 7
        %v337 = vshll.u32 %v282, 16
        %v339 = vor.u32 %v336, %v337
        %v341 = vshrl.u32 %v283, 16
        %v343 = vrot.slane %v341, 7
        %v344 = vshll.u32 %v283, 16
        %v346 = vor.u32 %v343, %v344
        %v348 = vshrl.u32 %v284, 16
        %v350 = vrot.slane %v348, 7
        %v351 = vshll.u32 %v284, 16
        %v353 = vor.u32 %v350, %v351
        %v355 = vshrl.u32 %v285, 16
        %v357 = vrot.slane %v355, 7
        %v358 = vshll.u32 %v285, 16
        %v360 = vor.u32 %v357, %v358
        %v362 = vshrl.u32 %v286, 16
        %v364 = vrot.slane %v362, 7
        %v365 = vshll.u32 %v286, 16
        %v367 = vor.u32 %v364, %v365
        %v369 = vshrl.u32 %v287, 16
        %v371 = vrot.slane %v369, 7
        %v372 = vshll.u32 %v287, 16
        %v374 = vor.u32 %v371, %v372
        %v376 = vshrl.u32 %v288, 16
        %v378 = vrot.slane %v376, 7
        %v379 = vshll.u32 %v288, 16
        %v381 = vor.u32 %v378, %v379
        %v383 = vshrl.u32 %v289, 16
        %v385 = vrot.slane %v383, 7
        %v386 = vshll.u32 %v289, 16
        %v388 = vor.u32 %v385, %v386
        %v390 = vshrl.u32 %v290, 16
        %v392 = vrot.slane %v390, 7
        %v393 = vshll.u32 %v290, 16
        %v395 = vor.u32 %v392, %v393
        %s411 = scalar_lea.vmem [#allocation2], 8
        %vm412 = vcmask 31744
        %vm413 = vsmask.f32 7938
        %vm414 = vmand %vm412, %vm413
        %v415 = vld [vmem:[%s411] sm:$0xff]
        %v416 = vsel %vm414, %v297, %v415
        %417 = vst [vmem:[%s411] sm:$0xff] %v416
        %v418 = vld [vmem:[%s411 + $0x8] sm:$0xff]
        %v419 = vsel %vm414, %v304, %v418
        %420 = vst [vmem:[%s411 + $0x8] sm:$0xff] %v419
        %v421 = vld [vmem:[%s411 + $0x10] sm:$0xff]
        %v422 = vsel %vm414, %v311, %v421
        %423 = vst [vmem:[%s411 + $0x10] sm:$0xff] %v422
        %v424 = vld [vmem:[%s411 + $0x18] sm:$0xff]
        %v425 = vsel %vm414, %v318, %v424
        %426 = vst [vmem:[%s411 + $0x18] sm:$0xff] %v425
        %v427 = vld [vmem:[%s411 + $0x20] sm:$0xff]
        %v428 = vsel %vm414, %v325, %v427
        %429 = vst [vmem:[%s411 + $0x20] sm:$0xff] %v428
        %v430 = vld [vmem:[%s411 + $0x28] sm:$0xff]
        %v431 = vsel %vm414, %v332, %v430
        %432 = vst [vmem:[%s411 + $0x28] sm:$0xff] %v431
        %v433 = vld [vmem:[%s411 + $0x30] sm:$0xff]
        %v434 = vsel %vm414, %v339, %v433
        %435 = vst [vmem:[%s411 + $0x30] sm:$0xff] %v434
        %v436 = vld [vmem:[%s411 + $0x38] sm:$0xff]
        %v437 = vsel %vm414, %v346, %v436
        %438 = vst [vmem:[%s411 + $0x38] sm:$0xff] %v437
        %v439 = vld [vmem:[%s411 + $0x40] sm:$0xff]
        %v440 = vsel %vm414, %v353, %v439
        %441 = vst [vmem:[%s411 + $0x40] sm:$0xff] %v440
        %v442 = vld [vmem:[%s411 + $0x48] sm:$0xff]
        %v443 = vsel %vm414, %v360, %v442
        %444 = vst [vmem:[%s411 + $0x48] sm:$0xff] %v443
        %v445 = vld [vmem:[%s411 + $0x50] sm:$0xff]
        %v446 = vsel %vm414, %v367, %v445
        %447 = vst [vmem:[%s411 + $0x50] sm:$0xff] %v446
        %v448 = vld [vmem:[%s411 + $0x58] sm:$0xff]
        %v449 = vsel %vm414, %v374, %v448
        %450 = vst [vmem:[%s411 + $0x58] sm:$0xff] %v449
        %v451 = vld [vmem:[%s411 + $0x60] sm:$0xff]
        %v452 = vsel %vm414, %v381, %v451
        %453 = vst [vmem:[%s411 + $0x60] sm:$0xff] %v452
        %v454 = vld [vmem:[%s411 + $0x68] sm:$0xff]
        %v455 = vsel %vm414, %v388, %v454
        %456 = vst [vmem:[%s411 + $0x68] sm:$0xff] %v455
        %v457 = vld [vmem:[%s411 + $0x70] sm:$0xff]
        %v458 = vsel %vm414, %v395, %v457
        %459 = vst [vmem:[%s411 + $0x70] sm:$0xff] %v458
        %v460 = vld [vmem:[%s168] sm:$0xf]
        %v461 = vld [vmem:[%s168 + $0x4] sm:$0xf]
        %v462 = vld [vmem:[%s168 + $0x8] sm:$0xf]
        %v463 = vld [vmem:[%s168 + $0xc] sm:$0xf]
        %v464 = vld [vmem:[%s168 + $0x10] sm:$0xf]
        %v465 = vld [vmem:[%s168 + $0x14] sm:$0xf]
        %v466 = vld [vmem:[%s168 + $0x18] sm:$0xf]
        %v467 = vld [vmem:[%s168 + $0x1c] sm:$0xf]
        %v468 = vld [vmem:[%s168 + $0x20] sm:$0xf]
        %v469 = vld [vmem:[%s168 + $0x24] sm:$0xf]
        %v470 = vld [vmem:[%s168 + $0x28] sm:$0xf]
        %v471 = vld [vmem:[%s168 + $0x2c] sm:$0xf]
        %v472 = vld [vmem:[%s168 + $0x30] sm:$0xf]
        %v473 = vld [vmem:[%s168 + $0x34] sm:$0xf]
        %v474 = vld [vmem:[%s168 + $0x38] sm:$0xf]
        %v475 = vld [vmem:[%s168 + $0x3c] sm:$0xf]
        %v476 = vld [vmem:[%s168 + $0x40] sm:$0xf]
        %v477 = vld [vmem:[%s168 + $0x44] sm:$0xf]
        %v478 = vld [vmem:[%s168 + $0x48] sm:$0xf]
        %v479 = vld [vmem:[%s168 + $0x4c] sm:$0xf]
        %v480 = vld [vmem:[%s168 + $0x50] sm:$0xf]
        %v481 = vld [vmem:[%s168 + $0x54] sm:$0xf]
        %v482 = vld [vmem:[%s168 + $0x58] sm:$0xf]
        %v483 = vld [vmem:[%s168 + $0x5c] sm:$0xf]
        %v484 = vld [vmem:[%s168 + $0x60] sm:$0xf]
        %v485 = vld [vmem:[%s168 + $0x64] sm:$0xf]
        %v486 = vld [vmem:[%s168 + $0x68] sm:$0xf]
        %v487 = vld [vmem:[%s168 + $0x6c] sm:$0xf]
        %v488 = vld [vmem:[%s168 + $0x70] sm:$0xf]
        %v489 = vld [vmem:[%s168 + $0x74] sm:$0xf]
        %v520 = vunpack.c.l.b16 %v460
        %v521 = vunpack.c.l.b16 %v461
        %v522 = vunpack.c.l.b16 %v462
        %v523 = vunpack.c.l.b16 %v463
        %v524 = vunpack.c.l.b16 %v464
        %v525 = vunpack.c.l.b16 %v465
        %v526 = vunpack.c.l.b16 %v466
        %v527 = vunpack.c.l.b16 %v467
        %v528 = vunpack.c.l.b16 %v468
        %v529 = vunpack.c.l.b16 %v469
        %v530 = vunpack.c.l.b16 %v470
        %v531 = vunpack.c.l.b16 %v471
        %v532 = vunpack.c.l.b16 %v472
        %v533 = vunpack.c.l.b16 %v473
        %v534 = vunpack.c.l.b16 %v474
        %v535 = vunpack.c.l.b16 %v475
        %v536 = vunpack.c.l.b16 %v476
        %v537 = vunpack.c.l.b16 %v477
        %v538 = vunpack.c.l.b16 %v478
        %v539 = vunpack.c.l.b16 %v479
        %v540 = vunpack.c.l.b16 %v480
        %v541 = vunpack.c.l.b16 %v481
        %v542 = vunpack.c.l.b16 %v482
        %v543 = vunpack.c.l.b16 %v483
        %v544 = vunpack.c.l.b16 %v484
        %v545 = vunpack.c.l.b16 %v485
        %v546 = vunpack.c.l.b16 %v486
        %v547 = vunpack.c.l.b16 %v487
        %v548 = vunpack.c.l.b16 %v488
        %v549 = vunpack.c.l.b16 %v489
        %v550 = vpack.c.b16 %v521, %v520
        %v551 = vpack.c.b16 %v523, %v522
        %v552 = vpack.c.b16 %v525, %v524
        %v553 = vpack.c.b16 %v527, %v526
        %v554 = vpack.c.b16 %v529, %v528
        %v555 = vpack.c.b16 %v531, %v530
        %v556 = vpack.c.b16 %v533, %v532
        %v557 = vpack.c.b16 %v535, %v534
        %v558 = vpack.c.b16 %v537, %v536
        %v559 = vpack.c.b16 %v539, %v538
        %v560 = vpack.c.b16 %v541, %v540
        %v561 = vpack.c.b16 %v543, %v542
        %v562 = vpack.c.b16 %v545, %v544
        %v563 = vpack.c.b16 %v547, %v546
        %v564 = vpack.c.b16 %v549, %v548
        %565 = vrot.lane.b32.xlu0 %v550, 4
        %v566 = vpop.permute.xlu0 %565
        %567 = vrot.lane.b32.xlu0 %v551, 4
        %v568 = vpop.permute.xlu0 %567
        %569 = vrot.lane.b32.xlu0 %v552, 4
        %v570 = vpop.permute.xlu0 %569
        %571 = vrot.lane.b32.xlu0 %v553, 4
        %v572 = vpop.permute.xlu0 %571
        %573 = vrot.lane.b32.xlu0 %v554, 4
        %v574 = vpop.permute.xlu0 %573
        %575 = vrot.lane.b32.xlu0 %v555, 4
        %v576 = vpop.permute.xlu0 %575
        %577 = vrot.lane.b32.xlu0 %v556, 4
        %v578 = vpop.permute.xlu0 %577
        %579 = vrot.lane.b32.xlu0 %v557, 4
        %v580 = vpop.permute.xlu0 %579
        %581 = vrot.lane.b32.xlu0 %v558, 4
        %v582 = vpop.permute.xlu0 %581
        %583 = vrot.lane.b32.xlu0 %v559, 4
        %v584 = vpop.permute.xlu0 %583
        %585 = vrot.lane.b32.xlu0 %v560, 4
        %v586 = vpop.permute.xlu0 %585
        %587 = vrot.lane.b32.xlu0 %v561, 4
        %v588 = vpop.permute.xlu0 %587
        %589 = vrot.lane.b32.xlu0 %v562, 4
        %v590 = vpop.permute.xlu0 %589
        %591 = vrot.lane.b32.xlu0 %v563, 4
        %v592 = vpop.permute.xlu0 %591
        %593 = vrot.lane.b32.xlu0 %v564, 4
        %v594 = vpop.permute.xlu0 %593
        %vm610 = vcmask 64544
        %611 = vst.msk [vmem:[%s411] sm:$0xff] %vm610, %v566
        %612 = vst.msk [vmem:[%s411 + $0x8] sm:$0xff] %vm610, %v568
        %613 = vst.msk [vmem:[%s411 + $0x10] sm:$0xff] %vm610, %v570
        %614 = vst.msk [vmem:[%s411 + $0x18] sm:$0xff] %vm610, %v572
        %615 = vst.msk [vmem:[%s411 + $0x20] sm:$0xff] %vm610, %v574
        %616 = vst.msk [vmem:[%s411 + $0x28] sm:$0xff] %vm610, %v576
        %617 = vst.msk [vmem:[%s411 + $0x30] sm:$0xff] %vm610, %v578
        %618 = vst.msk [vmem:[%s411 + $0x38] sm:$0xff] %vm610, %v580
        %619 = vst.msk [vmem:[%s411 + $0x40] sm:$0xff] %vm610, %v582
        %620 = vst.msk [vmem:[%s411 + $0x48] sm:$0xff] %vm610, %v584
        %621 = vst.msk [vmem:[%s411 + $0x50] sm:$0xff] %vm610, %v586
        %622 = vst.msk [vmem:[%s411 + $0x58] sm:$0xff] %vm610, %v588
        %623 = vst.msk [vmem:[%s411 + $0x60] sm:$0xff] %vm610, %v590
        %624 = vst.msk [vmem:[%s411 + $0x68] sm:$0xff] %vm610, %v592
        %625 = vst.msk [vmem:[%s411 + $0x70] sm:$0xff] %vm610, %v594
        %v626 = vld [vmem:[%s168] sm:$0xf]
        %v627 = vld [vmem:[%s168 + $0x4] sm:$0xf]
        %v628 = vld [vmem:[%s168 + $0x8] sm:$0xf]
        %v629 = vld [vmem:[%s168 + $0xc] sm:$0xf]
        %v630 = vld [vmem:[%s168 + $0x10] sm:$0xf]
        %v631 = vld [vmem:[%s168 + $0x14] sm:$0xf]
        %v632 = vld [vmem:[%s168 + $0x18] sm:$0xf]
        %v633 = vld [vmem:[%s168 + $0x1c] sm:$0xf]
        %v634 = vld [vmem:[%s168 + $0x20] sm:$0xf]
        %v635 = vld [vmem:[%s168 + $0x24] sm:$0xf]
        %v636 = vld [vmem:[%s168 + $0x28] sm:$0xf]
        %v637 = vld [vmem:[%s168 + $0x2c] sm:$0xf]
        %v638 = vld [vmem:[%s168 + $0x30] sm:$0xf]
        %v639 = vld [vmem:[%s168 + $0x34] sm:$0xf]
        %v640 = vld [vmem:[%s168 + $0x38] sm:$0xf]
        %v641 = vld [vmem:[%s168 + $0x3c] sm:$0xf]
        %v642 = vld [vmem:[%s168 + $0x40] sm:$0xf]
        %v643 = vld [vmem:[%s168 + $0x44] sm:$0xf]
        %v644 = vld [vmem:[%s168 + $0x48] sm:$0xf]
        %v645 = vld [vmem:[%s168 + $0x4c] sm:$0xf]
        %v646 = vld [vmem:[%s168 + $0x50] sm:$0xf]
        %v647 = vld [vmem:[%s168 + $0x54] sm:$0xf]
        %v648 = vld [vmem:[%s168 + $0x58] sm:$0xf]
        %v649 = vld [vmem:[%s168 + $0x5c] sm:$0xf]
        %v650 = vld [vmem:[%s168 + $0x60] sm:$0xf]
        %v651 = vld [vmem:[%s168 + $0x64] sm:$0xf]
        %v652 = vld [vmem:[%s168 + $0x68] sm:$0xf]
        %v653 = vld [vmem:[%s168 + $0x6c] sm:$0xf]
        %v654 = vld [vmem:[%s168 + $0x70] sm:$0xf]
        %v655 = vld [vmem:[%s168 + $0x74] sm:$0xf]
        %v686 = vunpack.c.l.b16 %v626
        %v687 = vunpack.c.l.b16 %v627
        %v688 = vunpack.c.l.b16 %v628
        %v689 = vunpack.c.l.b16 %v629
        %v690 = vunpack.c.l.b16 %v630
        %v691 = vunpack.c.l.b16 %v631
        %v692 = vunpack.c.l.b16 %v632
        %v693 = vunpack.c.l.b16 %v633
        %v694 = vunpack.c.l.b16 %v634
        %v695 = vunpack.c.l.b16 %v635
        %v696 = vunpack.c.l.b16 %v636
        %v697 = vunpack.c.l.b16 %v637
        %v698 = vunpack.c.l.b16 %v638
        %v699 = vunpack.c.l.b16 %v639
        %v700 = vunpack.c.l.b16 %v640
        %v701 = vunpack.c.l.b16 %v641
        %v702 = vunpack.c.l.b16 %v642
        %v703 = vunpack.c.l.b16 %v643
        %v704 = vunpack.c.l.b16 %v644
        %v705 = vunpack.c.l.b16 %v645
        %v706 = vunpack.c.l.b16 %v646
        %v707 = vunpack.c.l.b16 %v647
        %v708 = vunpack.c.l.b16 %v648
        %v709 = vunpack.c.l.b16 %v649
        %v710 = vunpack.c.l.b16 %v650
        %v711 = vunpack.c.l.b16 %v651
        %v712 = vunpack.c.l.b16 %v652
        %v713 = vunpack.c.l.b16 %v653
        %v714 = vunpack.c.l.b16 %v654
        %v715 = vunpack.c.l.b16 %v655
        %v716 = vpack.c.b16 %v687, %v686
        %v717 = vpack.c.b16 %v689, %v688
        %v718 = vpack.c.b16 %v691, %v690
        %v719 = vpack.c.b16 %v693, %v692
        %v720 = vpack.c.b16 %v695, %v694
        %v721 = vpack.c.b16 %v697, %v696
        %v722 = vpack.c.b16 %v699, %v698
        %v723 = vpack.c.b16 %v701, %v700
        %v724 = vpack.c.b16 %v703, %v702
        %v725 = vpack.c.b16 %v705, %v704
        %v726 = vpack.c.b16 %v707, %v706
        %v727 = vpack.c.b16 %v709, %v708
        %v728 = vpack.c.b16 %v711, %v710
        %v729 = vpack.c.b16 %v713, %v712
        %v730 = vpack.c.b16 %v715, %v714
        %v732 = vshrl.u32 %v716, 16
        %v734 = vshll.u32 %v716, 16
        %v736 = vrot.slane %v734, 1
        %v737 = vor.u32 %v732, %v736
        %v739 = vshrl.u32 %v717, 16
        %v741 = vshll.u32 %v717, 16
        %v743 = vrot.slane %v741, 1
        %v744 = vor.u32 %v739, %v743
        %v746 = vshrl.u32 %v718, 16
        %v748 = vshll.u32 %v718, 16
        %v750 = vrot.slane %v748, 1
        %v751 = vor.u32 %v746, %v750
        %v753 = vshrl.u32 %v719, 16
        %v755 = vshll.u32 %v719, 16
        %v757 = vrot.slane %v755, 1
        %v758 = vor.u32 %v753, %v757
        %v760 = vshrl.u32 %v720, 16
        %v762 = vshll.u32 %v720, 16
        %v764 = vrot.slane %v762, 1
        %v765 = vor.u32 %v760, %v764
        %v767 = vshrl.u32 %v721, 16
        %v769 = vshll.u32 %v721, 16
        %v771 = vrot.slane %v769, 1
        %v772 = vor.u32 %v767, %v771
        %v774 = vshrl.u32 %v722, 16
        %v776 = vshll.u32 %v722, 16
        %v778 = vrot.slane %v776, 1
        %v779 = vor.u32 %v774, %v778
        %v781 = vshrl.u32 %v723, 16
        %v783 = vshll.u32 %v723, 16
        %v785 = vrot.slane %v783, 1
        %v786 = vor.u32 %v781, %v785
        %v788 = vshrl.u32 %v724, 16
        %v790 = vshll.u32 %v724, 16
        %v792 = vrot.slane %v790, 1
        %v793 = vor.u32 %v788, %v792
        %v795 = vshrl.u32 %v725, 16
        %v797 = vshll.u32 %v725, 16
        %v799 = vrot.slane %v797, 1
        %v800 = vor.u32 %v795, %v799
        %v802 = vshrl.u32 %v726, 16
        %v804 = vshll.u32 %v726, 16
        %v806 = vrot.slane %v804, 1
        %v807 = vor.u32 %v802, %v806
        %v809 = vshrl.u32 %v727, 16
        %v811 = vshll.u32 %v727, 16
        %v813 = vrot.slane %v811, 1
        %v814 = vor.u32 %v809, %v813
        %v816 = vshrl.u32 %v728, 16
        %v818 = vshll.u32 %v728, 16
        %v820 = vrot.slane %v818, 1
        %v821 = vor.u32 %v816, %v820
        %v823 = vshrl.u32 %v729, 16
        %v825 = vshll.u32 %v729, 16
        %v827 = vrot.slane %v825, 1
        %v828 = vor.u32 %v823, %v827
        %v830 = vshrl.u32 %v730, 16
        %v832 = vshll.u32 %v730, 16
        %v834 = vrot.slane %v832, 1
        %v835 = vor.u32 %v830, %v834
        %836 = vrot.lane.b32.xlu0 %v737, 8
        %v837 = vpop.permute.xlu0 %836
        %838 = vrot.lane.b32.xlu0 %v744, 8
        %v839 = vpop.permute.xlu0 %838
        %840 = vrot.lane.b32.xlu0 %v751, 8
        %v841 = vpop.permute.xlu0 %840
        %842 = vrot.lane.b32.xlu0 %v758, 8
        %v843 = vpop.permute.xlu0 %842
        %844 = vrot.lane.b32.xlu0 %v765, 8
        %v845 = vpop.permute.xlu0 %844
        %846 = vrot.lane.b32.xlu0 %v772, 8
        %v847 = vpop.permute.xlu0 %846
        %848 = vrot.lane.b32.xlu0 %v779, 8
        %v849 = vpop.permute.xlu0 %848
        %850 = vrot.lane.b32.xlu0 %v786, 8
        %v851 = vpop.permute.xlu0 %850
        %852 = vrot.lane.b32.xlu0 %v793, 8
        %v853 = vpop.permute.xlu0 %852
        %854 = vrot.lane.b32.xlu0 %v800, 8
        %v855 = vpop.permute.xlu0 %854
        %856 = vrot.lane.b32.xlu0 %v807, 8
        %v857 = vpop.permute.xlu0 %856
        %858 = vrot.lane.b32.xlu0 %v814, 8
        %v859 = vpop.permute.xlu0 %858
        %860 = vrot.lane.b32.xlu0 %v821, 8
        %v861 = vpop.permute.xlu0 %860
        %862 = vrot.lane.b32.xlu0 %v828, 8
        %v863 = vpop.permute.xlu0 %862
        %864 = vrot.lane.b32.xlu0 %v835, 8
        %v865 = vpop.permute.xlu0 %864
        %vm881 = vcmask 97344
        %vm882 = vsmask.f32 7424
        %vm883 = vmand %vm881, %vm882
        %v884 = vld [vmem:[%s411] sm:$0xff]
        %v885 = vsel %vm883, %v837, %v884
        %886 = vst [vmem:[%s411] sm:$0xff] %v885
        %v887 = vld [vmem:[%s411 + $0x8] sm:$0xff]
        %v888 = vsel %vm883, %v839, %v887
        %889 = vst [vmem:[%s411 + $0x8] sm:$0xff] %v888
        %v890 = vld [vmem:[%s411 + $0x10] sm:$0xff]
        %v891 = vsel %vm883, %v841, %v890
        %892 = vst [vmem:[%s411 + $0x10] sm:$0xff] %v891
        %v893 = vld [vmem:[%s411 + $0x18] sm:$0xff]
        %v894 = vsel %vm883, %v843, %v893
        %895 = vst [vmem:[%s411 + $0x18] sm:$0xff] %v894
        %v896 = vld [vmem:[%s411 + $0x20] sm:$0xff]
        %v897 = vsel %vm883, %v845, %v896
        %898 = vst [vmem:[%s411 + $0x20] sm:$0xff] %v897
        %v899 = vld [vmem:[%s411 + $0x28] sm:$0xff]
        %v900 = vsel %vm883, %v847, %v899
        %901 = vst [vmem:[%s411 + $0x28] sm:$0xff] %v900
        %v902 = vld [vmem:[%s411 + $0x30] sm:$0xff]
        %v903 = vsel %vm883, %v849, %v902
        %904 = vst [vmem:[%s411 + $0x30] sm:$0xff] %v903
        %v905 = vld [vmem:[%s411 + $0x38] sm:$0xff]
        %v906 = vsel %vm883, %v851, %v905
        %907 = vst [vmem:[%s411 + $0x38] sm:$0xff] %v906
        %v908 = vld [vmem:[%s411 + $0x40] sm:$0xff]
        %v909 = vsel %vm883, %v853, %v908
        %910 = vst [vmem:[%s411 + $0x40] sm:$0xff] %v909
        %v911 = vld [vmem:[%s411 + $0x48] sm:$0xff]
        %v912 = vsel %vm883, %v855, %v911
        %913 = vst [vmem:[%s411 + $0x48] sm:$0xff] %v912
        %v914 = vld [vmem:[%s411 + $0x50] sm:$0xff]
        %v915 = vsel %vm883, %v857, %v914
        %916 = vst [vmem:[%s411 + $0x50] sm:$0xff] %v915
        %v917 = vld [vmem:[%s411 + $0x58] sm:$0xff]
        %v918 = vsel %vm883, %v859, %v917
        %919 = vst [vmem:[%s411 + $0x58] sm:$0xff] %v918
        %v920 = vld [vmem:[%s411 + $0x60] sm:$0xff]
        %v921 = vsel %vm883, %v861, %v920
        %922 = vst [vmem:[%s411 + $0x60] sm:$0xff] %v921
        %v923 = vld [vmem:[%s411 + $0x68] sm:$0xff]
        %v924 = vsel %vm883, %v863, %v923
        %925 = vst [vmem:[%s411 + $0x68] sm:$0xff] %v924
        %v926 = vld [vmem:[%s411 + $0x70] sm:$0xff]
        %v927 = vsel %vm883, %v865, %v926
        %928 = vst [vmem:[%s411 + $0x70] sm:$0xff] %v927
        %v929 = vld [vmem:[%s168] sm:$0xf]
        %v930 = vld [vmem:[%s168 + $0x4] sm:$0xf]
        %v931 = vld [vmem:[%s168 + $0x8] sm:$0xf]
        %v932 = vld [vmem:[%s168 + $0xc] sm:$0xf]
        %v933 = vld [vmem:[%s168 + $0x10] sm:$0xf]
        %v934 = vld [vmem:[%s168 + $0x14] sm:$0xf]
        %v935 = vld [vmem:[%s168 + $0x18] sm:$0xf]
        %v936 = vld [vmem:[%s168 + $0x1c] sm:$0xf]
        %v937 = vld [vmem:[%s168 + $0x20] sm:$0xf]
        %v938 = vld [vmem:[%s168 + $0x24] sm:$0xf]
        %v939 = vld [vmem:[%s168 + $0x28] sm:$0xf]
        %v940 = vld [vmem:[%s168 + $0x2c] sm:$0xf]
        %v941 = vld [vmem:[%s168 + $0x30] sm:$0xf]
        %v942 = vld [vmem:[%s168 + $0x34] sm:$0xf]
        %v943 = vld [vmem:[%s168 + $0x38] sm:$0xf]
        %v944 = vld [vmem:[%s168 + $0x3c] sm:$0xf]
        %v945 = vld [vmem:[%s168 + $0x40] sm:$0xf]
        %v946 = vld [vmem:[%s168 + $0x44] sm:$0xf]
        %v947 = vld [vmem:[%s168 + $0x48] sm:$0xf]
        %v948 = vld [vmem:[%s168 + $0x4c] sm:$0xf]
        %v949 = vld [vmem:[%s168 + $0x50] sm:$0xf]
        %v950 = vld [vmem:[%s168 + $0x54] sm:$0xf]
        %v951 = vld [vmem:[%s168 + $0x58] sm:$0xf]
        %v952 = vld [vmem:[%s168 + $0x5c] sm:$0xf]
        %v953 = vld [vmem:[%s168 + $0x60] sm:$0xf]
        %v954 = vld [vmem:[%s168 + $0x64] sm:$0xf]
        %v955 = vld [vmem:[%s168 + $0x68] sm:$0xf]
        %v956 = vld [vmem:[%s168 + $0x6c] sm:$0xf]
        %v957 = vld [vmem:[%s168 + $0x70] sm:$0xf]
        %v958 = vld [vmem:[%s168 + $0x74] sm:$0xf]
        %v959 = vld [vmem:[%s168 + $0x78] sm:$0xf]
        %v960 = vld [vmem:[%s168 + $0x7c] sm:$0xf]
        %v993 = vunpack.c.l.b16 %v929
        %v994 = vunpack.c.l.b16 %v930
        %v995 = vunpack.c.l.b16 %v931
        %v996 = vunpack.c.l.b16 %v932
        %v997 = vunpack.c.l.b16 %v933
        %v998 = vunpack.c.l.b16 %v934
        %v999 = vunpack.c.l.b16 %v935
        %v1000 = vunpack.c.l.b16 %v936
        %v1001 = vunpack.c.l.b16 %v937
        %v1002 = vunpack.c.l.b16 %v938
        %v1003 = vunpack.c.l.b16 %v939
        %v1004 = vunpack.c.l.b16 %v940
        %v1005 = vunpack.c.l.b16 %v941
        %v1006 = vunpack.c.l.b16 %v942
        %v1007 = vunpack.c.l.b16 %v943
        %v1008 = vunpack.c.l.b16 %v944
        %v1009 = vunpack.c.l.b16 %v945
        %v1010 = vunpack.c.l.b16 %v946
        %v1011 = vunpack.c.l.b16 %v947
        %v1012 = vunpack.c.l.b16 %v948
        %v1013 = vunpack.c.l.b16 %v949
        %v1014 = vunpack.c.l.b16 %v950
        %v1015 = vunpack.c.l.b16 %v951
        %v1016 = vunpack.c.l.b16 %v952
        %v1017 = vunpack.c.l.b16 %v953
        %v1018 = vunpack.c.l.b16 %v954
        %v1019 = vunpack.c.l.b16 %v955
        %v1020 = vunpack.c.l.b16 %v956
        %v1021 = vunpack.c.l.b16 %v957
        %v1022 = vunpack.c.l.b16 %v958
        %v1023 = vunpack.c.l.b16 %v959
        %v1024 = vunpack.c.l.b16 %v960
        %v1025 = vpack.c.b16 %v994, %v993
        %v1026 = vpack.c.b16 %v996, %v995
        %v1027 = vpack.c.b16 %v998, %v997
        %v1028 = vpack.c.b16 %v1000, %v999
        %v1029 = vpack.c.b16 %v1002, %v1001
        %v1030 = vpack.c.b16 %v1004, %v1003
        %v1031 = vpack.c.b16 %v1006, %v1005
        %v1032 = vpack.c.b16 %v1008, %v1007
        %v1033 = vpack.c.b16 %v1010, %v1009
        %v1034 = vpack.c.b16 %v1012, %v1011
        %v1035 = vpack.c.b16 %v1014, %v1013
        %v1036 = vpack.c.b16 %v1016, %v1015
        %v1037 = vpack.c.b16 %v1018, %v1017
        %v1038 = vpack.c.b16 %v1020, %v1019
        %v1039 = vpack.c.b16 %v1022, %v1021
        %v1040 = vpack.c.b16 %v1024, %v1023
        %v1042 = vshrl.u32 %v1025, 16
        %v1044 = vrot.slane %v1042, 7
        %v1045 = vshll.u32 %v1025, 16
        %v1047 = vor.u32 %v1044, %v1045
        %v1049 = vshrl.u32 %v1026, 16
        %v1051 = vrot.slane %v1049, 7
        %v1052 = vshll.u32 %v1026, 16
        %v1054 = vor.u32 %v1051, %v1052
        %v1056 = vshrl.u32 %v1027, 16
        %v1058 = vrot.slane %v1056, 7
        %v1059 = vshll.u32 %v1027, 16
        %v1061 = vor.u32 %v1058, %v1059
        %v1063 = vshrl.u32 %v1028, 16
        %v1065 = vrot.slane %v1063, 7
        %v1066 = vshll.u32 %v1028, 16
        %v1068 = vor.u32 %v1065, %v1066
        %v1070 = vshrl.u32 %v1029, 16
        %v1072 = vrot.slane %v1070, 7
        %v1073 = vshll.u32 %v1029, 16
        %v1075 = vor.u32 %v1072, %v1073
        %v1077 = vshrl.u32 %v1030, 16
        %v1079 = vrot.slane %v1077, 7
        %v1080 = vshll.u32 %v1030, 16
        %v1082 = vor.u32 %v1079, %v1080
        %v1084 = vshrl.u32 %v1031, 16
        %v1086 = vrot.slane %v1084, 7
        %v1087 = vshll.u32 %v1031, 16
        %v1089 = vor.u32 %v1086, %v1087
        %v1091 = vshrl.u32 %v1032, 16
        %v1093 = vrot.slane %v1091, 7
        %v1094 = vshll.u32 %v1032, 16
        %v1096 = vor.u32 %v1093, %v1094
        %v1098 = vshrl.u32 %v1033, 16
        %v1100 = vrot.slane %v1098, 7
        %v1101 = vshll.u32 %v1033, 16
        %v1103 = vor.u32 %v1100, %v1101
        %v1105 = vshrl.u32 %v1034, 16
        %v1107 = vrot.slane %v1105, 7
        %v1108 = vshll.u32 %v1034, 16
        %v1110 = vor.u32 %v1107, %v1108
        %v1112 = vshrl.u32 %v1035, 16
        %v1114 = vrot.slane %v1112, 7
        %v1115 = vshll.u32 %v1035, 16
        %v1117 = vor.u32 %v1114, %v1115
        %v1119 = vshrl.u32 %v1036, 16
        %v1121 = vrot.slane %v1119, 7
        %v1122 = vshll.u32 %v1036, 16
        %v1124 = vor.u32 %v1121, %v1122
        %v1126 = vshrl.u32 %v1037, 16
        %v1128 = vrot.slane %v1126, 7
        %v1129 = vshll.u32 %v1037, 16
        %v1131 = vor.u32 %v1128, %v1129
        %v1133 = vshrl.u32 %v1038, 16
        %v1135 = vrot.slane %v1133, 7
        %v1136 = vshll.u32 %v1038, 16
        %v1138 = vor.u32 %v1135, %v1136
        %v1140 = vshrl.u32 %v1039, 16
        %v1142 = vrot.slane %v1140, 7
        %v1143 = vshll.u32 %v1039, 16
        %v1145 = vor.u32 %v1142, %v1143
        %v1147 = vshrl.u32 %v1040, 16
        %v1149 = vrot.slane %v1147, 7
        %v1150 = vshll.u32 %v1040, 16
        %v1152 = vor.u32 %v1149, %v1150
        %1153 = vrot.lane.b32.xlu0 %v1047, 12
        %v1154 = vpop.permute.xlu0 %1153
        %1155 = vrot.lane.b32.xlu0 %v1054, 12
        %v1156 = vpop.permute.xlu0 %1155
        %1157 = vrot.lane.b32.xlu0 %v1061, 12
        %v1158 = vpop.permute.xlu0 %1157
        %1159 = vrot.lane.b32.xlu0 %v1068, 12
        %v1160 = vpop.permute.xlu0 %1159
        %1161 = vrot.lane.b32.xlu0 %v1075, 12
        %v1162 = vpop.permute.xlu0 %1161
        %1163 = vrot.lane.b32.xlu0 %v1082, 12
        %v1164 = vpop.permute.xlu0 %1163
        %1165 = vrot.lane.b32.xlu0 %v1089, 12
        %v1166 = vpop.permute.xlu0 %1165
        %1167 = vrot.lane.b32.xlu0 %v1096, 12
        %v1168 = vpop.permute.xlu0 %1167
        %1169 = vrot.lane.b32.xlu0 %v1103, 12
        %v1170 = vpop.permute.xlu0 %1169
        %1171 = vrot.lane.b32.xlu0 %v1110, 12
        %v1172 = vpop.permute.xlu0 %1171
        %1173 = vrot.lane.b32.xlu0 %v1117, 12
        %v1174 = vpop.permute.xlu0 %1173
        %1175 = vrot.lane.b32.xlu0 %v1124, 12
        %v1176 = vpop.permute.xlu0 %1175
        %1177 = vrot.lane.b32.xlu0 %v1131, 12
        %v1178 = vpop.permute.xlu0 %1177
        %1179 = vrot.lane.b32.xlu0 %v1138, 12
        %v1180 = vpop.permute.xlu0 %1179
        %1181 = vrot.lane.b32.xlu0 %v1145, 12
        %v1182 = vpop.permute.xlu0 %1181
        %1183 = vrot.lane.b32.xlu0 %v1152, 12
        %v1184 = vpop.permute.xlu0 %1183
        %vm1201 = vcmask 130144
        %vm1202 = vmand %vm1201, %vm413
        %v1203 = vld [vmem:[#allocation2] sm:$0xff]
        %v1204 = vsel %vm1202, %v1154, %v1203
        %1205 = vst [vmem:[#allocation2] sm:$0xff] %v1204
        %v1206 = vld [vmem:[#allocation2 + $0x8] sm:$0xff]
        %v1207 = vsel %vm1202, %v1156, %v1206
        %1208 = vst [vmem:[#allocation2 + $0x8] sm:$0xff] %v1207
        %v1209 = vld [vmem:[#allocation2 + $0x10] sm:$0xff]
        %v1210 = vsel %vm1202, %v1158, %v1209
        %1211 = vst [vmem:[#allocation2 + $0x10] sm:$0xff] %v1210
        %v1212 = vld [vmem:[#allocation2 + $0x18] sm:$0xff]
        %v1213 = vsel %vm1202, %v1160, %v1212
        %1214 = vst [vmem:[#allocation2 + $0x18] sm:$0xff] %v1213
        %v1215 = vld [vmem:[#allocation2 + $0x20] sm:$0xff]
        %v1216 = vsel %vm1202, %v1162, %v1215
        %1217 = vst [vmem:[#allocation2 + $0x20] sm:$0xff] %v1216
        %v1218 = vld [vmem:[#allocation2 + $0x28] sm:$0xff]
        %v1219 = vsel %vm1202, %v1164, %v1218
        %1220 = vst [vmem:[#allocation2 + $0x28] sm:$0xff] %v1219
        %v1221 = vld [vmem:[#allocation2 + $0x30] sm:$0xff]
        %v1222 = vsel %vm1202, %v1166, %v1221
        %1223 = vst [vmem:[#allocation2 + $0x30] sm:$0xff] %v1222
        %v1224 = vld [vmem:[#allocation2 + $0x38] sm:$0xff]
        %v1225 = vsel %vm1202, %v1168, %v1224
        %1226 = vst [vmem:[#allocation2 + $0x38] sm:$0xff] %v1225
        %v1227 = vld [vmem:[#allocation2 + $0x40] sm:$0xff]
        %v1228 = vsel %vm1202, %v1170, %v1227
        %1229 = vst [vmem:[#allocation2 + $0x40] sm:$0xff] %v1228
        %v1230 = vld [vmem:[#allocation2 + $0x48] sm:$0xff]
        %v1231 = vsel %vm1202, %v1172, %v1230
        %1232 = vst [vmem:[#allocation2 + $0x48] sm:$0xff] %v1231
        %v1233 = vld [vmem:[#allocation2 + $0x50] sm:$0xff]
        %v1234 = vsel %vm1202, %v1174, %v1233
        %1235 = vst [vmem:[#allocation2 + $0x50] sm:$0xff] %v1234
        %v1236 = vld [vmem:[#allocation2 + $0x58] sm:$0xff]
        %v1237 = vsel %vm1202, %v1176, %v1236
        %1238 = vst [vmem:[#allocation2 + $0x58] sm:$0xff] %v1237
        %v1239 = vld [vmem:[#allocation2 + $0x60] sm:$0xff]
        %v1240 = vsel %vm1202, %v1178, %v1239
        %1241 = vst [vmem:[#allocation2 + $0x60] sm:$0xff] %v1240
        %v1242 = vld [vmem:[#allocation2 + $0x68] sm:$0xff]
        %v1243 = vsel %vm1202, %v1180, %v1242
        %1244 = vst [vmem:[#allocation2 + $0x68] sm:$0xff] %v1243
        %v1245 = vld [vmem:[#allocation2 + $0x70] sm:$0xff]
        %v1246 = vsel %vm1202, %v1182, %v1245
        %1247 = vst [vmem:[#allocation2 + $0x70] sm:$0xff] %v1246
        %v1248 = vld [vmem:[#allocation2 + $0x78] sm:$0xff]
        %v1249 = vsel %vm1202, %v1184, %v1248
        %1250 = vst [vmem:[#allocation2 + $0x78] sm:$0xff] %v1249
        %v1251 = vld [vmem:[%s168] sm:$0xf]
        %v1252 = vld [vmem:[%s168 + $0x4] sm:$0xf]
        %v1253 = vld [vmem:[%s168 + $0x8] sm:$0xf]
        %v1254 = vld [vmem:[%s168 + $0xc] sm:$0xf]
        %v1255 = vld [vmem:[%s168 + $0x10] sm:$0xf]
        %v1256 = vld [vmem:[%s168 + $0x14] sm:$0xf]
        %v1257 = vld [vmem:[%s168 + $0x18] sm:$0xf]
        %v1258 = vld [vmem:[%s168 + $0x1c] sm:$0xf]
        %v1259 = vld [vmem:[%s168 + $0x20] sm:$0xf]
        %v1260 = vld [vmem:[%s168 + $0x24] sm:$0xf]
        %v1261 = vld [vmem:[%s168 + $0x28] sm:$0xf]
        %v1262 = vld [vmem:[%s168 + $0x2c] sm:$0xf]
        %v1263 = vld [vmem:[%s168 + $0x30] sm:$0xf]
        %v1264 = vld [vmem:[%s168 + $0x34] sm:$0xf]
        %v1265 = vld [vmem:[%s168 + $0x38] sm:$0xf]
        %v1266 = vld [vmem:[%s168 + $0x3c] sm:$0xf]
        %v1267 = vld [vmem:[%s168 + $0x40] sm:$0xf]
        %v1268 = vld [vmem:[%s168 + $0x44] sm:$0xf]
        %v1269 = vld [vmem:[%s168 + $0x48] sm:$0xf]
        %v1270 = vld [vmem:[%s168 + $0x4c] sm:$0xf]
        %v1271 = vld [vmem:[%s168 + $0x50] sm:$0xf]
        %v1272 = vld [vmem:[%s168 + $0x54] sm:$0xf]
        %v1273 = vld [vmem:[%s168 + $0x58] sm:$0xf]
        %v1274 = vld [vmem:[%s168 + $0x5c] sm:$0xf]
        %v1275 = vld [vmem:[%s168 + $0x60] sm:$0xf]
        %v1276 = vld [vmem:[%s168 + $0x64] sm:$0xf]
        %v1277 = vld [vmem:[%s168 + $0x68] sm:$0xf]
        %v1278 = vld [vmem:[%s168 + $0x6c] sm:$0xf]
        %v1279 = vld [vmem:[%s168 + $0x70] sm:$0xf]
        %v1280 = vld [vmem:[%s168 + $0x74] sm:$0xf]
        %v1281 = vld [vmem:[%s168 + $0x78] sm:$0xf]
        %v1282 = vld [vmem:[%s168 + $0x7c] sm:$0xf]
        %v1315 = vunpack.c.l.b16 %v1251
        %v1316 = vunpack.c.l.b16 %v1252
        %v1317 = vunpack.c.l.b16 %v1253
        %v1318 = vunpack.c.l.b16 %v1254
        %v1319 = vunpack.c.l.b16 %v1255
        %v1320 = vunpack.c.l.b16 %v1256
        %v1321 = vunpack.c.l.b16 %v1257
        %v1322 = vunpack.c.l.b16 %v1258
        %v1323 = vunpack.c.l.b16 %v1259
        %v1324 = vunpack.c.l.b16 %v1260
        %v1325 = vunpack.c.l.b16 %v1261
        %v1326 = vunpack.c.l.b16 %v1262
        %v1327 = vunpack.c.l.b16 %v1263
        %v1328 = vunpack.c.l.b16 %v1264
        %v1329 = vunpack.c.l.b16 %v1265
        %v1330 = vunpack.c.l.b16 %v1266
        %v1331 = vunpack.c.l.b16 %v1267
        %v1332 = vunpack.c.l.b16 %v1268
        %v1333 = vunpack.c.l.b16 %v1269
        %v1334 = vunpack.c.l.b16 %v1270
        %v1335 = vunpack.c.l.b16 %v1271
        %v1336 = vunpack.c.l.b16 %v1272
        %v1337 = vunpack.c.l.b16 %v1273
        %v1338 = vunpack.c.l.b16 %v1274
        %v1339 = vunpack.c.l.b16 %v1275
        %v1340 = vunpack.c.l.b16 %v1276
        %v1341 = vunpack.c.l.b16 %v1277
        %v1342 = vunpack.c.l.b16 %v1278
        %v1343 = vunpack.c.l.b16 %v1279
        %v1344 = vunpack.c.l.b16 %v1280
        %v1345 = vunpack.c.l.b16 %v1281
        %v1346 = vunpack.c.l.b16 %v1282
        %v1347 = vpack.c.b16 %v1316, %v1315
        %v1348 = vpack.c.b16 %v1318, %v1317
        %v1349 = vpack.c.b16 %v1320, %v1319
        %v1350 = vpack.c.b16 %v1322, %v1321
        %v1351 = vpack.c.b16 %v1324, %v1323
        %v1352 = vpack.c.b16 %v1326, %v1325
        %v1353 = vpack.c.b16 %v1328, %v1327
        %v1354 = vpack.c.b16 %v1330, %v1329
        %v1355 = vpack.c.b16 %v1332, %v1331
        %v1356 = vpack.c.b16 %v1334, %v1333
        %v1357 = vpack.c.b16 %v1336, %v1335
        %v1358 = vpack.c.b16 %v1338, %v1337
        %v1359 = vpack.c.b16 %v1340, %v1339
        %v1360 = vpack.c.b16 %v1342, %v1341
        %v1361 = vpack.c.b16 %v1344, %v1343
        %v1362 = vpack.c.b16 %v1346, %v1345
        %1363 = vrot.lane.b32.xlu0 %v1347, 16
        %v1364 = vpop.permute.xlu0 %1363
        %1365 = vrot.lane.b32.xlu0 %v1348, 16
        %v1366 = vpop.permute.xlu0 %1365
        %1367 = vrot.lane.b32.xlu0 %v1349, 16
        %v1368 = vpop.permute.xlu0 %1367
        %1369 = vrot.lane.b32.xlu0 %v1350, 16
        %v1370 = vpop.permute.xlu0 %1369
        %1371 = vrot.lane.b32.xlu0 %v1351, 16
        %v1372 = vpop.permute.xlu0 %1371
        %1373 = vrot.lane.b32.xlu0 %v1352, 16
        %v1374 = vpop.permute.xlu0 %1373
        %1375 = vrot.lane.b32.xlu0 %v1353, 16
        %v1376 = vpop.permute.xlu0 %1375
        %1377 = vrot.lane.b32.xlu0 %v1354, 16
        %v1378 = vpop.permute.xlu0 %1377
        %1379 = vrot.lane.b32.xlu0 %v1355, 16
        %v1380 = vpop.permute.xlu0 %1379
        %1381 = vrot.lane.b32.xlu0 %v1356, 16
        %v1382 = vpop.permute.xlu0 %1381
        %1383 = vrot.lane.b32.xlu0 %v1357, 16
        %v1384 = vpop.permute.xlu0 %1383
        %1385 = vrot.lane.b32.xlu0 %v1358, 16
        %v1386 = vpop.permute.xlu0 %1385
        %1387 = vrot.lane.b32.xlu0 %v1359, 16
        %v1388 = vpop.permute.xlu0 %1387
        %1389 = vrot.lane.b32.xlu0 %v1360, 16
        %v1390 = vpop.permute.xlu0 %1389
        %1391 = vrot.lane.b32.xlu0 %v1361, 16
        %v1392 = vpop.permute.xlu0 %1391
        %1393 = vrot.lane.b32.xlu0 %v1362, 16
        %v1394 = vpop.permute.xlu0 %1393
        %vm1411 = vcmask 162944
        %1412 = vst.msk [vmem:[#allocation2] sm:$0xff] %vm1411, %v1364
        %1413 = vst.msk [vmem:[#allocation2 + $0x8] sm:$0xff] %vm1411, %v1366
        %1414 = vst.msk [vmem:[#allocation2 + $0x10] sm:$0xff] %vm1411, %v1368
        %1415 = vst.msk [vmem:[#allocation2 + $0x18] sm:$0xff] %vm1411, %v1370
        %1416 = vst.msk [vmem:[#allocation2 + $0x20] sm:$0xff] %vm1411, %v1372
        %1417 = vst.msk [vmem:[#allocation2 + $0x28] sm:$0xff] %vm1411, %v1374
        %1418 = vst.msk [vmem:[#allocation2 + $0x30] sm:$0xff] %vm1411, %v1376
        %1419 = vst.msk [vmem:[#allocation2 + $0x38] sm:$0xff] %vm1411, %v1378
        %1420 = vst.msk [vmem:[#allocation2 + $0x40] sm:$0xff] %vm1411, %v1380
        %1421 = vst.msk [vmem:[#allocation2 + $0x48] sm:$0xff] %vm1411, %v1382
        %1422 = vst.msk [vmem:[#allocation2 + $0x50] sm:$0xff] %vm1411, %v1384
        %1423 = vst.msk [vmem:[#allocation2 + $0x58] sm:$0xff] %vm1411, %v1386
        %1424 = vst.msk [vmem:[#allocation2 + $0x60] sm:$0xff] %vm1411, %v1388
        %1425 = vst.msk [vmem:[#allocation2 + $0x68] sm:$0xff] %vm1411, %v1390
        %1426 = vst.msk [vmem:[#allocation2 + $0x70] sm:$0xff] %vm1411, %v1392
        %1427 = vst.msk [vmem:[#allocation2 + $0x78] sm:$0xff] %vm1411, %v1394
        %v1428 = vld [vmem:[%s168] sm:$0xf]
        %v1429 = vld [vmem:[%s168 + $0x4] sm:$0xf]
        %v1430 = vld [vmem:[%s168 + $0x8] sm:$0xf]
        %v1431 = vld [vmem:[%s168 + $0xc] sm:$0xf]
        %v1432 = vld [vmem:[%s168 + $0x10] sm:$0xf]
        %v1433 = vld [vmem:[%s168 + $0x14] sm:$0xf]
        %v1434 = vld [vmem:[%s168 + $0x18] sm:$0xf]
        %v1435 = vld [vmem:[%s168 + $0x1c] sm:$0xf]
        %v1436 = vld [vmem:[%s168 + $0x20] sm:$0xf]
        %v1437 = vld [vmem:[%s168 + $0x24] sm:$0xf]
        %v1438 = vld [vmem:[%s168 + $0x28] sm:$0xf]
        %v1439 = vld [vmem:[%s168 + $0x2c] sm:$0xf]
        %v1440 = vld [vmem:[%s168 + $0x30] sm:$0xf]
        %v1441 = vld [vmem:[%s168 + $0x34] sm:$0xf]
        %v1442 = vld [vmem:[%s168 + $0x38] sm:$0xf]
        %v1443 = vld [vmem:[%s168 + $0x3c] sm:$0xf]
        %v1444 = vld [vmem:[%s168 + $0x40] sm:$0xf]
        %v1445 = vld [vmem:[%s168 + $0x44] sm:$0xf]
        %v1446 = vld [vmem:[%s168 + $0x48] sm:$0xf]
        %v1447 = vld [vmem:[%s168 + $0x4c] sm:$0xf]
        %v1448 = vld [vmem:[%s168 + $0x50] sm:$0xf]
        %v1449 = vld [vmem:[%s168 + $0x54] sm:$0xf]
        %v1450 = vld [vmem:[%s168 + $0x58] sm:$0xf]
        %v1451 = vld [vmem:[%s168 + $0x5c] sm:$0xf]
        %v1452 = vld [vmem:[%s168 + $0x60] sm:$0xf]
        %v1453 = vld [vmem:[%s168 + $0x64] sm:$0xf]
        %v1454 = vld [vmem:[%s168 + $0x68] sm:$0xf]
        %v1455 = vld [vmem:[%s168 + $0x6c] sm:$0xf]
        %v1456 = vld [vmem:[%s168 + $0x70] sm:$0xf]
        %v1457 = vld [vmem:[%s168 + $0x74] sm:$0xf]
        %v1458 = vld [vmem:[%s168 + $0x78] sm:$0xf]
        %v1459 = vld [vmem:[%s168 + $0x7c] sm:$0xf]
        %v1492 = vunpack.c.l.b16 %v1428
        %v1493 = vunpack.c.l.b16 %v1429
        %v1494 = vunpack.c.l.b16 %v1430
        %v1495 = vunpack.c.l.b16 %v1431
        %v1496 = vunpack.c.l.b16 %v1432
        %v1497 = vunpack.c.l.b16 %v1433
        %v1498 = vunpack.c.l.b16 %v1434
        %v1499 = vunpack.c.l.b16 %v1435
        %v1500 = vunpack.c.l.b16 %v1436
        %v1501 = vunpack.c.l.b16 %v1437
        %v1502 = vunpack.c.l.b16 %v1438
        %v1503 = vunpack.c.l.b16 %v1439
        %v1504 = vunpack.c.l.b16 %v1440
        %v1505 = vunpack.c.l.b16 %v1441
        %v1506 = vunpack.c.l.b16 %v1442
        %v1507 = vunpack.c.l.b16 %v1443
        %v1508 = vunpack.c.l.b16 %v1444
        %v1509 = vunpack.c.l.b16 %v1445
        %v1510 = vunpack.c.l.b16 %v1446
        %v1511 = vunpack.c.l.b16 %v1447
        %v1512 = vunpack.c.l.b16 %v1448
        %v1513 = vunpack.c.l.b16 %v1449
        %v1514 = vunpack.c.l.b16 %v1450
        %v1515 = vunpack.c.l.b16 %v1451
        %v1516 = vunpack.c.l.b16 %v1452
        %v1517 = vunpack.c.l.b16 %v1453
        %v1518 = vunpack.c.l.b16 %v1454
        %v1519 = vunpack.c.l.b16 %v1455
        %v1520 = vunpack.c.l.b16 %v1456
        %v1521 = vunpack.c.l.b16 %v1457
        %v1522 = vunpack.c.l.b16 %v1458
        %v1523 = vunpack.c.l.b16 %v1459
        %v1524 = vpack.c.b16 %v1493, %v1492
        %v1525 = vpack.c.b16 %v1495, %v1494
        %v1526 = vpack.c.b16 %v1497, %v1496
        %v1527 = vpack.c.b16 %v1499, %v1498
        %v1528 = vpack.c.b16 %v1501, %v1500
        %v1529 = vpack.c.b16 %v1503, %v1502
        %v1530 = vpack.c.b16 %v1505, %v1504
        %v1531 = vpack.c.b16 %v1507, %v1506
        %v1532 = vpack.c.b16 %v1509, %v1508
        %v1533 = vpack.c.b16 %v1511, %v1510
        %v1534 = vpack.c.b16 %v1513, %v1512
        %v1535 = vpack.c.b16 %v1515, %v1514
        %v1536 = vpack.c.b16 %v1517, %v1516
        %v1537 = vpack.c.b16 %v1519, %v1518
        %v1538 = vpack.c.b16 %v1521, %v1520
        %v1539 = vpack.c.b16 %v1523, %v1522
        %v1541 = vshrl.u32 %v1524, 16
        %v1543 = vshll.u32 %v1524, 16
        %v1545 = vrot.slane %v1543, 1
        %v1546 = vor.u32 %v1541, %v1545
        %v1548 = vshrl.u32 %v1525, 16
        %v1550 = vshll.u32 %v1525, 16
        %v1552 = vrot.slane %v1550, 1
        %v1553 = vor.u32 %v1548, %v1552
        %v1555 = vshrl.u32 %v1526, 16
        %v1557 = vshll.u32 %v1526, 16
        %v1559 = vrot.slane %v1557, 1
        %v1560 = vor.u32 %v1555, %v1559
        %v1562 = vshrl.u32 %v1527, 16
        %v1564 = vshll.u32 %v1527, 16
        %v1566 = vrot.slane %v1564, 1
        %v1567 = vor.u32 %v1562, %v1566
        %v1569 = vshrl.u32 %v1528, 16
        %v1571 = vshll.u32 %v1528, 16
        %v1573 = vrot.slane %v1571, 1
        %v1574 = vor.u32 %v1569, %v1573
        %v1576 = vshrl.u32 %v1529, 16
        %v1578 = vshll.u32 %v1529, 16
        %v1580 = vrot.slane %v1578, 1
        %v1581 = vor.u32 %v1576, %v1580
        %v1583 = vshrl.u32 %v1530, 16
        %v1585 = vshll.u32 %v1530, 16
        %v1587 = vrot.slane %v1585, 1
        %v1588 = vor.u32 %v1583, %v1587
        %v1590 = vshrl.u32 %v1531, 16
        %v1592 = vshll.u32 %v1531, 16
        %v1594 = vrot.slane %v1592, 1
        %v1595 = vor.u32 %v1590, %v1594
        %v1597 = vshrl.u32 %v1532, 16
        %v1599 = vshll.u32 %v1532, 16
        %v1601 = vrot.slane %v1599, 1
        %v1602 = vor.u32 %v1597, %v1601
        %v1604 = vshrl.u32 %v1533, 16
        %v1606 = vshll.u32 %v1533, 16
        %v1608 = vrot.slane %v1606, 1
        %v1609 = vor.u32 %v1604, %v1608
        %v1611 = vshrl.u32 %v1534, 16
        %v1613 = vshll.u32 %v1534, 16
        %v1615 = vrot.slane %v1613, 1
        %v1616 = vor.u32 %v1611, %v1615
        %v1618 = vshrl.u32 %v1535, 16
        %v1620 = vshll.u32 %v1535, 16
        %v1622 = vrot.slane %v1620, 1
        %v1623 = vor.u32 %v1618, %v1622
        %v1625 = vshrl.u32 %v1536, 16
        %v1627 = vshll.u32 %v1536, 16
        %v1629 = vrot.slane %v1627, 1
        %v1630 = vor.u32 %v1625, %v1629
        %v1632 = vshrl.u32 %v1537, 16
        %v1634 = vshll.u32 %v1537, 16
        %v1636 = vrot.slane %v1634, 1
        %v1637 = vor.u32 %v1632, %v1636
        %v1639 = vshrl.u32 %v1538, 16
        %v1641 = vshll.u32 %v1538, 16
        %v1643 = vrot.slane %v1641, 1
        %v1644 = vor.u32 %v1639, %v1643
        %v1646 = vshrl.u32 %v1539, 16
        %v1648 = vshll.u32 %v1539, 16
        %v1650 = vrot.slane %v1648, 1
        %v1651 = vor.u32 %v1646, %v1650
        %1652 = vrot.lane.b32.xlu0 %v1546, 20
        %v1653 = vpop.permute.xlu0 %1652
        %1654 = vrot.lane.b32.xlu0 %v1553, 20
        %v1655 = vpop.permute.xlu0 %1654
        %1656 = vrot.lane.b32.xlu0 %v1560, 20
        %v1657 = vpop.permute.xlu0 %1656
        %1658 = vrot.lane.b32.xlu0 %v1567, 20
        %v1659 = vpop.permute.xlu0 %1658
        %1660 = vrot.lane.b32.xlu0 %v1574, 20
        %v1661 = vpop.permute.xlu0 %1660
        %1662 = vrot.lane.b32.xlu0 %v1581, 20
        %v1663 = vpop.permute.xlu0 %1662
        %1664 = vrot.lane.b32.xlu0 %v1588, 20
        %v1665 = vpop.permute.xlu0 %1664
        %1666 = vrot.lane.b32.xlu0 %v1595, 20
        %v1667 = vpop.permute.xlu0 %1666
        %1668 = vrot.lane.b32.xlu0 %v1602, 20
        %v1669 = vpop.permute.xlu0 %1668
        %1670 = vrot.lane.b32.xlu0 %v1609, 20
        %v1671 = vpop.permute.xlu0 %1670
        %1672 = vrot.lane.b32.xlu0 %v1616, 20
        %v1673 = vpop.permute.xlu0 %1672
        %1674 = vrot.lane.b32.xlu0 %v1623, 20
        %v1675 = vpop.permute.xlu0 %1674
        %1676 = vrot.lane.b32.xlu0 %v1630, 20
        %v1677 = vpop.permute.xlu0 %1676
        %1678 = vrot.lane.b32.xlu0 %v1637, 20
        %v1679 = vpop.permute.xlu0 %1678
        %1680 = vrot.lane.b32.xlu0 %v1644, 20
        %v1681 = vpop.permute.xlu0 %1680
        %1682 = vrot.lane.b32.xlu0 %v1651, 20
        %v1683 = vpop.permute.xlu0 %1682
        %vm1700 = vcmask 195744
        %vm1701 = vmand %vm1700, %vm882
        %v1702 = vld [vmem:[#allocation2] sm:$0xff]
        %v1703 = vsel %vm1701, %v1653, %v1702
        %1704 = vst [vmem:[#allocation2] sm:$0xff] %v1703
        %v1705 = vld [vmem:[#allocation2 + $0x8] sm:$0xff]
        %v1706 = vsel %vm1701, %v1655, %v1705
        %1707 = vst [vmem:[#allocation2 + $0x8] sm:$0xff] %v1706
        %v1708 = vld [vmem:[#allocation2 + $0x10] sm:$0xff]
        %v1709 = vsel %vm1701, %v1657, %v1708
        %1710 = vst [vmem:[#allocation2 + $0x10] sm:$0xff] %v1709
        %v1711 = vld [vmem:[#allocation2 + $0x18] sm:$0xff]
        %v1712 = vsel %vm1701, %v1659, %v1711
        %1713 = vst [vmem:[#allocation2 + $0x18] sm:$0xff] %v1712
        %v1714 = vld [vmem:[#allocation2 + $0x20] sm:$0xff]
        %v1715 = vsel %vm1701, %v1661, %v1714
        %1716 = vst [vmem:[#allocation2 + $0x20] sm:$0xff] %v1715
        %v1717 = vld [vmem:[#allocation2 + $0x28] sm:$0xff]
        %v1718 = vsel %vm1701, %v1663, %v1717
        %1719 = vst [vmem:[#allocation2 + $0x28] sm:$0xff] %v1718
        %v1720 = vld [vmem:[#allocation2 + $0x30] sm:$0xff]
        %v1721 = vsel %vm1701, %v1665, %v1720
        %1722 = vst [vmem:[#allocation2 + $0x30] sm:$0xff] %v1721
        %v1723 = vld [vmem:[#allocation2 + $0x38] sm:$0xff]
        %v1724 = vsel %vm1701, %v1667, %v1723
        %1725 = vst [vmem:[#allocation2 + $0x38] sm:$0xff] %v1724
        %v1726 = vld [vmem:[#allocation2 + $0x40] sm:$0xff]
        %v1727 = vsel %vm1701, %v1669, %v1726
        %1728 = vst [vmem:[#allocation2 + $0x40] sm:$0xff] %v1727
        %v1729 = vld [vmem:[#allocation2 + $0x48] sm:$0xff]
        %v1730 = vsel %vm1701, %v1671, %v1729
        %1731 = vst [vmem:[#allocation2 + $0x48] sm:$0xff] %v1730
        %v1732 = vld [vmem:[#allocation2 + $0x50] sm:$0xff]
        %v1733 = vsel %vm1701, %v1673, %v1732
        %1734 = vst [vmem:[#allocation2 + $0x50] sm:$0xff] %v1733
        %v1735 = vld [vmem:[#allocation2 + $0x58] sm:$0xff]
        %v1736 = vsel %vm1701, %v1675, %v1735
        %1737 = vst [vmem:[#allocation2 + $0x58] sm:$0xff] %v1736
        %v1738 = vld [vmem:[#allocation2 + $0x60] sm:$0xff]
        %v1739 = vsel %vm1701, %v1677, %v1738
        %1740 = vst [vmem:[#allocation2 + $0x60] sm:$0xff] %v1739
        %v1741 = vld [vmem:[#allocation2 + $0x68] sm:$0xff]
        %v1742 = vsel %vm1701, %v1679, %v1741
        %1743 = vst [vmem:[#allocation2 + $0x68] sm:$0xff] %v1742
        %v1744 = vld [vmem:[#allocation2 + $0x70] sm:$0xff]
        %v1745 = vsel %vm1701, %v1681, %v1744
        %1746 = vst [vmem:[#allocation2 + $0x70] sm:$0xff] %v1745
        %v1747 = vld [vmem:[#allocation2 + $0x78] sm:$0xff]
        %v1748 = vsel %vm1701, %v1683, %v1747
        %1749 = vst [vmem:[#allocation2 + $0x78] sm:$0xff] %v1748
        %s1750 = scalar_lea.vmem %s168, 8
        %v1751 = vld [vmem:[%s1750] sm:$0xf]
        %v1752 = vld [vmem:[%s1750 + $0x4] sm:$0xf]
        %v1753 = vld [vmem:[%s1750 + $0x8] sm:$0xf]
        %v1754 = vld [vmem:[%s1750 + $0xc] sm:$0xf]
        %v1755 = vld [vmem:[%s1750 + $0x10] sm:$0xf]
        %v1756 = vld [vmem:[%s1750 + $0x14] sm:$0xf]
        %v1757 = vld [vmem:[%s1750 + $0x18] sm:$0xf]
        %v1758 = vld [vmem:[%s1750 + $0x1c] sm:$0xf]
        %v1759 = vld [vmem:[%s1750 + $0x20] sm:$0xf]
        %v1760 = vld [vmem:[%s1750 + $0x24] sm:$0xf]
        %v1761 = vld [vmem:[%s1750 + $0x28] sm:$0xf]
        %v1762 = vld [vmem:[%s1750 + $0x2c] sm:$0xf]
        %v1763 = vld [vmem:[%s1750 + $0x30] sm:$0xf]
        %v1764 = vld [vmem:[%s1750 + $0x34] sm:$0xf]
        %v1765 = vld [vmem:[%s1750 + $0x38] sm:$0xf]
        %v1766 = vld [vmem:[%s1750 + $0x3c] sm:$0xf]
        %v1767 = vld [vmem:[%s1750 + $0x40] sm:$0xf]
        %v1768 = vld [vmem:[%s1750 + $0x44] sm:$0xf]
        %v1769 = vld [vmem:[%s1750 + $0x48] sm:$0xf]
        %v1770 = vld [vmem:[%s1750 + $0x4c] sm:$0xf]
        %v1771 = vld [vmem:[%s1750 + $0x50] sm:$0xf]
        %v1772 = vld [vmem:[%s1750 + $0x54] sm:$0xf]
        %v1773 = vld [vmem:[%s1750 + $0x58] sm:$0xf]
        %v1774 = vld [vmem:[%s1750 + $0x5c] sm:$0xf]
        %v1775 = vld [vmem:[%s1750 + $0x60] sm:$0xf]
        %v1776 = vld [vmem:[%s1750 + $0x64] sm:$0xf]
        %v1777 = vld [vmem:[%s1750 + $0x68] sm:$0xf]
        %v1778 = vld [vmem:[%s1750 + $0x6c] sm:$0xf]
        %v1779 = vld [vmem:[%s1750 + $0x70] sm:$0xf]
        %v1780 = vld [vmem:[%s1750 + $0x74] sm:$0xf]
        %v1811 = vunpack.c.l.b16 %v1751
        %v1812 = vunpack.c.l.b16 %v1752
        %v1813 = vunpack.c.l.b16 %v1753
        %v1814 = vunpack.c.l.b16 %v1754
        %v1815 = vunpack.c.l.b16 %v1755
        %v1816 = vunpack.c.l.b16 %v1756
        %v1817 = vunpack.c.l.b16 %v1757
        %v1818 = vunpack.c.l.b16 %v1758
        %v1819 = vunpack.c.l.b16 %v1759
        %v1820 = vunpack.c.l.b16 %v1760
        %v1821 = vunpack.c.l.b16 %v1761
        %v1822 = vunpack.c.l.b16 %v1762
        %v1823 = vunpack.c.l.b16 %v1763
        %v1824 = vunpack.c.l.b16 %v1764
        %v1825 = vunpack.c.l.b16 %v1765
        %v1826 = vunpack.c.l.b16 %v1766
        %v1827 = vunpack.c.l.b16 %v1767
        %v1828 = vunpack.c.l.b16 %v1768
        %v1829 = vunpack.c.l.b16 %v1769
        %v1830 = vunpack.c.l.b16 %v1770
        %v1831 = vunpack.c.l.b16 %v1771
        %v1832 = vunpack.c.l.b16 %v1772
        %v1833 = vunpack.c.l.b16 %v1773
        %v1834 = vunpack.c.l.b16 %v1774
        %v1835 = vunpack.c.l.b16 %v1775
        %v1836 = vunpack.c.l.b16 %v1776
        %v1837 = vunpack.c.l.b16 %v1777
        %v1838 = vunpack.c.l.b16 %v1778
        %v1839 = vunpack.c.l.b16 %v1779
        %v1840 = vunpack.c.l.b16 %v1780
        %v1841 = vpack.c.b16 %v1812, %v1811
        %v1842 = vpack.c.b16 %v1814, %v1813
        %v1843 = vpack.c.b16 %v1816, %v1815
        %v1844 = vpack.c.b16 %v1818, %v1817
        %v1845 = vpack.c.b16 %v1820, %v1819
        %v1846 = vpack.c.b16 %v1822, %v1821
        %v1847 = vpack.c.b16 %v1824, %v1823
        %v1848 = vpack.c.b16 %v1826, %v1825
        %v1849 = vpack.c.b16 %v1828, %v1827
        %v1850 = vpack.c.b16 %v1830, %v1829
        %v1851 = vpack.c.b16 %v1832, %v1831
        %v1852 = vpack.c.b16 %v1834, %v1833
        %v1853 = vpack.c.b16 %v1836, %v1835
        %v1854 = vpack.c.b16 %v1838, %v1837
        %v1855 = vpack.c.b16 %v1840, %v1839
        %v1857 = vshrl.u32 %v1841, 16
        %v1859 = vrot.slane %v1857, 7
        %v1860 = vshll.u32 %v1841, 16
        %v1862 = vor.u32 %v1859, %v1860
        %v1864 = vshrl.u32 %v1842, 16
        %v1866 = vrot.slane %v1864, 7
        %v1867 = vshll.u32 %v1842, 16
        %v1869 = vor.u32 %v1866, %v1867
        %v1871 = vshrl.u32 %v1843, 16
        %v1873 = vrot.slane %v1871, 7
        %v1874 = vshll.u32 %v1843, 16
        %v1876 = vor.u32 %v1873, %v1874
        %v1878 = vshrl.u32 %v1844, 16
        %v1880 = vrot.slane %v1878, 7
        %v1881 = vshll.u32 %v1844, 16
        %v1883 = vor.u32 %v1880, %v1881
        %v1885 = vshrl.u32 %v1845, 16
        %v1887 = vrot.slane %v1885, 7
        %v1888 = vshll.u32 %v1845, 16
        %v1890 = vor.u32 %v1887, %v1888
        %v1892 = vshrl.u32 %v1846, 16
        %v1894 = vrot.slane %v1892, 7
        %v1895 = vshll.u32 %v1846, 16
        %v1897 = vor.u32 %v1894, %v1895
        %v1899 = vshrl.u32 %v1847, 16
        %v1901 = vrot.slane %v1899, 7
        %v1902 = vshll.u32 %v1847, 16
        %v1904 = vor.u32 %v1901, %v1902
        %v1906 = vshrl.u32 %v1848, 16
        %v1908 = vrot.slane %v1906, 7
        %v1909 = vshll.u32 %v1848, 16
        %v1911 = vor.u32 %v1908, %v1909
        %v1913 = vshrl.u32 %v1849, 16
        %v1915 = vrot.slane %v1913, 7
        %v1916 = vshll.u32 %v1849, 16
        %v1918 = vor.u32 %v1915, %v1916
        %v1920 = vshrl.u32 %v1850, 16
        %v1922 = vrot.slane %v1920, 7
        %v1923 = vshll.u32 %v1850, 16
        %v1925 = vor.u32 %v1922, %v1923
        %v1927 = vshrl.u32 %v1851, 16
        %v1929 = vrot.slane %v1927, 7
        %v1930 = vshll.u32 %v1851, 16
        %v1932 = vor.u32 %v1929, %v1930
        %v1934 = vshrl.u32 %v1852, 16
        %v1936 = vrot.slane %v1934, 7
        %v1937 = vshll.u32 %v1852, 16
        %v1939 = vor.u32 %v1936, %v1937
        %v1941 = vshrl.u32 %v1853, 16
        %v1943 = vrot.slane %v1941, 7
        %v1944 = vshll.u32 %v1853, 16
        %v1946 = vor.u32 %v1943, %v1944
        %v1948 = vshrl.u32 %v1854, 16
        %v1950 = vrot.slane %v1948, 7
        %v1951 = vshll.u32 %v1854, 16
        %v1953 = vor.u32 %v1950, %v1951
        %v1955 = vshrl.u32 %v1855, 16
        %v1957 = vrot.slane %v1955, 7
        %v1958 = vshll.u32 %v1855, 16
        %v1960 = vor.u32 %v1957, %v1958
        %1961 = vrot.lane.b32.xlu0 %v1862, 24
        %v1962 = vpop.permute.xlu0 %1961
        %1963 = vrot.lane.b32.xlu0 %v1869, 24
        %v1964 = vpop.permute.xlu0 %1963
        %1965 = vrot.lane.b32.xlu0 %v1876, 24
        %v1966 = vpop.permute.xlu0 %1965
        %1967 = vrot.lane.b32.xlu0 %v1883, 24
        %v1968 = vpop.permute.xlu0 %1967
        %1969 = vrot.lane.b32.xlu0 %v1890, 24
        %v1970 = vpop.permute.xlu0 %1969
        %1971 = vrot.lane.b32.xlu0 %v1897, 24
        %v1972 = vpop.permute.xlu0 %1971
        %1973 = vrot.lane.b32.xlu0 %v1904, 24
        %v1974 = vpop.permute.xlu0 %1973
        %1975 = vrot.lane.b32.xlu0 %v1911, 24
        %v1976 = vpop.permute.xlu0 %1975
        %1977 = vrot.lane.b32.xlu0 %v1918, 24
        %v1978 = vpop.permute.xlu0 %1977
        %1979 = vrot.lane.b32.xlu0 %v1925, 24
        %v1980 = vpop.permute.xlu0 %1979
        %1981 = vrot.lane.b32.xlu0 %v1932, 24
        %v1982 = vpop.permute.xlu0 %1981
        %1983 = vrot.lane.b32.xlu0 %v1939, 24
        %v1984 = vpop.permute.xlu0 %1983
        %1985 = vrot.lane.b32.xlu0 %v1946, 24
        %v1986 = vpop.permute.xlu0 %1985
        %1987 = vrot.lane.b32.xlu0 %v1953, 24
        %v1988 = vpop.permute.xlu0 %1987
        %1989 = vrot.lane.b32.xlu0 %v1960, 24
        %v1990 = vpop.permute.xlu0 %1989
        %vm2006 = vcmask 228544
        %vm2007 = vmand %vm2006, %vm413
        %v2008 = vld [vmem:[#allocation2] sm:$0xff]
        %v2009 = vsel %vm2007, %v1962, %v2008
        %2010 = vst [vmem:[#allocation2] sm:$0xff] %v2009
        %v2011 = vld [vmem:[#allocation2 + $0x8] sm:$0xff]
        %v2012 = vsel %vm2007, %v1964, %v2011
        %2013 = vst [vmem:[#allocation2 + $0x8] sm:$0xff] %v2012
        %v2014 = vld [vmem:[#allocation2 + $0x10] sm:$0xff]
        %v2015 = vsel %vm2007, %v1966, %v2014
        %2016 = vst [vmem:[#allocation2 + $0x10] sm:$0xff] %v2015
        %v2017 = vld [vmem:[#allocation2 + $0x18] sm:$0xff]
        %v2018 = vsel %vm2007, %v1968, %v2017
        %2019 = vst [vmem:[#allocation2 + $0x18] sm:$0xff] %v2018
        %v2020 = vld [vmem:[#allocation2 + $0x20] sm:$0xff]
        %v2021 = vsel %vm2007, %v1970, %v2020
        %2022 = vst [vmem:[#allocation2 + $0x20] sm:$0xff] %v2021
        %v2023 = vld [vmem:[#allocation2 + $0x28] sm:$0xff]
        %v2024 = vsel %vm2007, %v1972, %v2023
        %2025 = vst [vmem:[#allocation2 + $0x28] sm:$0xff] %v2024
        %v2026 = vld [vmem:[#allocation2 + $0x30] sm:$0xff]
        %v2027 = vsel %vm2007, %v1974, %v2026
        %2028 = vst [vmem:[#allocation2 + $0x30] sm:$0xff] %v2027
        %v2029 = vld [vmem:[#allocation2 + $0x38] sm:$0xff]
        %v2030 = vsel %vm2007, %v1976, %v2029
        %2031 = vst [vmem:[#allocation2 + $0x38] sm:$0xff] %v2030
        %v2032 = vld [vmem:[#allocation2 + $0x40] sm:$0xff]
        %v2033 = vsel %vm2007, %v1978, %v2032
        %2034 = vst [vmem:[#allocation2 + $0x40] sm:$0xff] %v2033
        %v2035 = vld [vmem:[#allocation2 + $0x48] sm:$0xff]
        %v2036 = vsel %vm2007, %v1980, %v2035
        %2037 = vst [vmem:[#allocation2 + $0x48] sm:$0xff] %v2036
        %v2038 = vld [vmem:[#allocation2 + $0x50] sm:$0xff]
        %v2039 = vsel %vm2007, %v1982, %v2038
        %2040 = vst [vmem:[#allocation2 + $0x50] sm:$0xff] %v2039
        %v2041 = vld [vmem:[#allocation2 + $0x58] sm:$0xff]
        %v2042 = vsel %vm2007, %v1984, %v2041
        %2043 = vst [vmem:[#allocation2 + $0x58] sm:$0xff] %v2042
        %v2044 = vld [vmem:[#allocation2 + $0x60] sm:$0xff]
        %v2045 = vsel %vm2007, %v1986, %v2044
        %2046 = vst [vmem:[#allocation2 + $0x60] sm:$0xff] %v2045
        %v2047 = vld [vmem:[#allocation2 + $0x68] sm:$0xff]
        %v2048 = vsel %vm2007, %v1988, %v2047
        %2049 = vst [vmem:[#allocation2 + $0x68] sm:$0xff] %v2048
        %v2050 = vld [vmem:[#allocation2 + $0x70] sm:$0xff]
        %v2051 = vsel %vm2007, %v1990, %v2050
        %2052 = vst [vmem:[#allocation2 + $0x70] sm:$0xff] %v2051
        %v2053 = vld [vmem:[%s1750] sm:$0xf]
        %v2054 = vld [vmem:[%s1750 + $0x4] sm:$0xf]
        %v2055 = vld [vmem:[%s1750 + $0x8] sm:$0xf]
        %v2056 = vld [vmem:[%s1750 + $0xc] sm:$0xf]
        %v2057 = vld [vmem:[%s1750 + $0x10] sm:$0xf]
        %v2058 = vld [vmem:[%s1750 + $0x14] sm:$0xf]
        %v2059 = vld [vmem:[%s1750 + $0x18] sm:$0xf]
        %v2060 = vld [vmem:[%s1750 + $0x1c] sm:$0xf]
        %v2061 = vld [vmem:[%s1750 + $0x20] sm:$0xf]
        %v2062 = vld [vmem:[%s1750 + $0x24] sm:$0xf]
        %v2063 = vld [vmem:[%s1750 + $0x28] sm:$0xf]
        %v2064 = vld [vmem:[%s1750 + $0x2c] sm:$0xf]
        %v2065 = vld [vmem:[%s1750 + $0x30] sm:$0xf]
        %v2066 = vld [vmem:[%s1750 + $0x34] sm:$0xf]
        %v2067 = vld [vmem:[%s1750 + $0x38] sm:$0xf]
        %v2068 = vld [vmem:[%s1750 + $0x3c] sm:$0xf]
        %v2069 = vld [vmem:[%s1750 + $0x40] sm:$0xf]
        %v2070 = vld [vmem:[%s1750 + $0x44] sm:$0xf]
        %v2071 = vld [vmem:[%s1750 + $0x48] sm:$0xf]
        %v2072 = vld [vmem:[%s1750 + $0x4c] sm:$0xf]
        %v2073 = vld [vmem:[%s1750 + $0x50] sm:$0xf]
        %v2074 = vld [vmem:[%s1750 + $0x54] sm:$0xf]
        %v2075 = vld [vmem:[%s1750 + $0x58] sm:$0xf]
        %v2076 = vld [vmem:[%s1750 + $0x5c] sm:$0xf]
        %v2077 = vld [vmem:[%s1750 + $0x60] sm:$0xf]
        %v2078 = vld [vmem:[%s1750 + $0x64] sm:$0xf]
        %v2079 = vld [vmem:[%s1750 + $0x68] sm:$0xf]
        %v2080 = vld [vmem:[%s1750 + $0x6c] sm:$0xf]
        %v2081 = vld [vmem:[%s1750 + $0x70] sm:$0xf]
        %v2082 = vld [vmem:[%s1750 + $0x74] sm:$0xf]
        %v2113 = vunpack.c.l.b16 %v2053
        %v2114 = vunpack.c.l.b16 %v2054
        %v2115 = vunpack.c.l.b16 %v2055
        %v2116 = vunpack.c.l.b16 %v2056
        %v2117 = vunpack.c.l.b16 %v2057
        %v2118 = vunpack.c.l.b16 %v2058
        %v2119 = vunpack.c.l.b16 %v2059
        %v2120 = vunpack.c.l.b16 %v2060
        %v2121 = vunpack.c.l.b16 %v2061
        %v2122 = vunpack.c.l.b16 %v2062
        %v2123 = vunpack.c.l.b16 %v2063
        %v2124 = vunpack.c.l.b16 %v2064
        %v2125 = vunpack.c.l.b16 %v2065
        %v2126 = vunpack.c.l.b16 %v2066
        %v2127 = vunpack.c.l.b16 %v2067
        %v2128 = vunpack.c.l.b16 %v2068
        %v2129 = vunpack.c.l.b16 %v2069
        %v2130 = vunpack.c.l.b16 %v2070
        %v2131 = vunpack.c.l.b16 %v2071
        %v2132 = vunpack.c.l.b16 %v2072
        %v2133 = vunpack.c.l.b16 %v2073
        %v2134 = vunpack.c.l.b16 %v2074
        %v2135 = vunpack.c.l.b16 %v2075
        %v2136 = vunpack.c.l.b16 %v2076
        %v2137 = vunpack.c.l.b16 %v2077
        %v2138 = vunpack.c.l.b16 %v2078
        %v2139 = vunpack.c.l.b16 %v2079
        %v2140 = vunpack.c.l.b16 %v2080
        %v2141 = vunpack.c.l.b16 %v2081
        %v2142 = vunpack.c.l.b16 %v2082
        %v2143 = vpack.c.b16 %v2114, %v2113
        %v2144 = vpack.c.b16 %v2116, %v2115
        %v2145 = vpack.c.b16 %v2118, %v2117
        %v2146 = vpack.c.b16 %v2120, %v2119
        %v2147 = vpack.c.b16 %v2122, %v2121
        %v2148 = vpack.c.b16 %v2124, %v2123
        %v2149 = vpack.c.b16 %v2126, %v2125
        %v2150 = vpack.c.b16 %v2128, %v2127
        %v2151 = vpack.c.b16 %v2130, %v2129
        %v2152 = vpack.c.b16 %v2132, %v2131
        %v2153 = vpack.c.b16 %v2134, %v2133
        %v2154 = vpack.c.b16 %v2136, %v2135
        %v2155 = vpack.c.b16 %v2138, %v2137
        %v2156 = vpack.c.b16 %v2140, %v2139
        %v2157 = vpack.c.b16 %v2142, %v2141
        %2158 = vrot.lane.b32.xlu0 %v2143, 28
        %v2159 = vpop.permute.xlu0 %2158
        %2160 = vrot.lane.b32.xlu0 %v2144, 28
        %v2161 = vpop.permute.xlu0 %2160
        %2162 = vrot.lane.b32.xlu0 %v2145, 28
        %v2163 = vpop.permute.xlu0 %2162
        %2164 = vrot.lane.b32.xlu0 %v2146, 28
        %v2165 = vpop.permute.xlu0 %2164
        %2166 = vrot.lane.b32.xlu0 %v2147, 28
        %v2167 = vpop.permute.xlu0 %2166
        %2168 = vrot.lane.b32.xlu0 %v2148, 28
        %v2169 = vpop.permute.xlu0 %2168
        %2170 = vrot.lane.b32.xlu0 %v2149, 28
        %v2171 = vpop.permute.xlu0 %2170
        %2172 = vrot.lane.b32.xlu0 %v2150, 28
        %v2173 = vpop.permute.xlu0 %2172
        %2174 = vrot.lane.b32.xlu0 %v2151, 28
        %v2175 = vpop.permute.xlu0 %2174
        %2176 = vrot.lane.b32.xlu0 %v2152, 28
        %v2177 = vpop.permute.xlu0 %2176
        %2178 = vrot.lane.b32.xlu0 %v2153, 28
        %v2179 = vpop.permute.xlu0 %2178
        %2180 = vrot.lane.b32.xlu0 %v2154, 28
        %v2181 = vpop.permute.xlu0 %2180
        %2182 = vrot.lane.b32.xlu0 %v2155, 28
        %v2183 = vpop.permute.xlu0 %2182
        %2184 = vrot.lane.b32.xlu0 %v2156, 28
        %v2185 = vpop.permute.xlu0 %2184
        %2186 = vrot.lane.b32.xlu0 %v2157, 28
        %v2187 = vpop.permute.xlu0 %2186
        %vm2203 = vcmask 261344
        %2204 = vst.msk [vmem:[#allocation2] sm:$0xff] %vm2203, %v2159
        %2205 = vst.msk [vmem:[#allocation2 + $0x8] sm:$0xff] %vm2203, %v2161
        %2206 = vst.msk [vmem:[#allocation2 + $0x10] sm:$0xff] %vm2203, %v2163
        %2207 = vst.msk [vmem:[#allocation2 + $0x18] sm:$0xff] %vm2203, %v2165
        %2208 = vst.msk [vmem:[#allocation2 + $0x20] sm:$0xff] %vm2203, %v2167
        %2209 = vst.msk [vmem:[#allocation2 + $0x28] sm:$0xff] %vm2203, %v2169
        %2210 = vst.msk [vmem:[#allocation2 + $0x30] sm:$0xff] %vm2203, %v2171
        %2211 = vst.msk [vmem:[#allocation2 + $0x38] sm:$0xff] %vm2203, %v2173
        %2212 = vst.msk [vmem:[#allocation2 + $0x40] sm:$0xff] %vm2203, %v2175
        %2213 = vst.msk [vmem:[#allocation2 + $0x48] sm:$0xff] %vm2203, %v2177
        %2214 = vst.msk [vmem:[#allocation2 + $0x50] sm:$0xff] %vm2203, %v2179
        %2215 = vst.msk [vmem:[#allocation2 + $0x58] sm:$0xff] %vm2203, %v2181
        %2216 = vst.msk [vmem:[#allocation2 + $0x60] sm:$0xff] %vm2203, %v2183
        %2217 = vst.msk [vmem:[#allocation2 + $0x68] sm:$0xff] %vm2203, %v2185
        %2218 = vst.msk [vmem:[#allocation2 + $0x70] sm:$0xff] %vm2203, %v2187
        %v2219 = vld [vmem:[%s1750] sm:$0xf]
        %v2220 = vld [vmem:[%s1750 + $0x4] sm:$0xf]
        %v2221 = vld [vmem:[%s1750 + $0x8] sm:$0xf]
        %v2222 = vld [vmem:[%s1750 + $0xc] sm:$0xf]
        %v2223 = vld [vmem:[%s1750 + $0x10] sm:$0xf]
        %v2224 = vld [vmem:[%s1750 + $0x14] sm:$0xf]
        %v2225 = vld [vmem:[%s1750 + $0x18] sm:$0xf]
        %v2226 = vld [vmem:[%s1750 + $0x1c] sm:$0xf]
        %v2227 = vld [vmem:[%s1750 + $0x20] sm:$0xf]
        %v2228 = vld [vmem:[%s1750 + $0x24] sm:$0xf]
        %v2229 = vld [vmem:[%s1750 + $0x28] sm:$0xf]
        %v2230 = vld [vmem:[%s1750 + $0x2c] sm:$0xf]
        %v2231 = vld [vmem:[%s1750 + $0x30] sm:$0xf]
        %v2232 = vld [vmem:[%s1750 + $0x34] sm:$0xf]
        %v2233 = vld [vmem:[%s1750 + $0x38] sm:$0xf]
        %v2234 = vld [vmem:[%s1750 + $0x3c] sm:$0xf]
        %v2235 = vld [vmem:[%s1750 + $0x40] sm:$0xf]
        %v2236 = vld [vmem:[%s1750 + $0x44] sm:$0xf]
        %v2237 = vld [vmem:[%s1750 + $0x48] sm:$0xf]
        %v2238 = vld [vmem:[%s1750 + $0x4c] sm:$0xf]
        %v2239 = vld [vmem:[%s1750 + $0x50] sm:$0xf]
        %v2240 = vld [vmem:[%s1750 + $0x54] sm:$0xf]
        %v2241 = vld [vmem:[%s1750 + $0x58] sm:$0xf]
        %v2242 = vld [vmem:[%s1750 + $0x5c] sm:$0xf]
        %v2243 = vld [vmem:[%s1750 + $0x60] sm:$0xf]
        %v2244 = vld [vmem:[%s1750 + $0x64] sm:$0xf]
        %v2245 = vld [vmem:[%s1750 + $0x68] sm:$0xf]
        %v2246 = vld [vmem:[%s1750 + $0x6c] sm:$0xf]
        %v2247 = vld [vmem:[%s1750 + $0x70] sm:$0xf]
        %v2248 = vld [vmem:[%s1750 + $0x74] sm:$0xf]
        %v2279 = vunpack.c.l.b16 %v2219
        %v2280 = vunpack.c.l.b16 %v2220
        %v2281 = vunpack.c.l.b16 %v2221
        %v2282 = vunpack.c.l.b16 %v2222
        %v2283 = vunpack.c.l.b16 %v2223
        %v2284 = vunpack.c.l.b16 %v2224
        %v2285 = vunpack.c.l.b16 %v2225
        %v2286 = vunpack.c.l.b16 %v2226
        %v2287 = vunpack.c.l.b16 %v2227
        %v2288 = vunpack.c.l.b16 %v2228
        %v2289 = vunpack.c.l.b16 %v2229
        %v2290 = vunpack.c.l.b16 %v2230
        %v2291 = vunpack.c.l.b16 %v2231
        %v2292 = vunpack.c.l.b16 %v2232
        %v2293 = vunpack.c.l.b16 %v2233
        %v2294 = vunpack.c.l.b16 %v2234
        %v2295 = vunpack.c.l.b16 %v2235
        %v2296 = vunpack.c.l.b16 %v2236
        %v2297 = vunpack.c.l.b16 %v2237
        %v2298 = vunpack.c.l.b16 %v2238
        %v2299 = vunpack.c.l.b16 %v2239
        %v2300 = vunpack.c.l.b16 %v2240
        %v2301 = vunpack.c.l.b16 %v2241
        %v2302 = vunpack.c.l.b16 %v2242
        %v2303 = vunpack.c.l.b16 %v2243
        %v2304 = vunpack.c.l.b16 %v2244
        %v2305 = vunpack.c.l.b16 %v2245
        %v2306 = vunpack.c.l.b16 %v2246
        %v2307 = vunpack.c.l.b16 %v2247
        %v2308 = vunpack.c.l.b16 %v2248
        %v2309 = vpack.c.b16 %v2280, %v2279
        %v2310 = vpack.c.b16 %v2282, %v2281
        %v2311 = vpack.c.b16 %v2284, %v2283
        %v2312 = vpack.c.b16 %v2286, %v2285
        %v2313 = vpack.c.b16 %v2288, %v2287
        %v2314 = vpack.c.b16 %v2290, %v2289
        %v2315 = vpack.c.b16 %v2292, %v2291
        %v2316 = vpack.c.b16 %v2294, %v2293
        %v2317 = vpack.c.b16 %v2296, %v2295
        %v2318 = vpack.c.b16 %v2298, %v2297
        %v2319 = vpack.c.b16 %v2300, %v2299
        %v2320 = vpack.c.b16 %v2302, %v2301
        %v2321 = vpack.c.b16 %v2304, %v2303
        %v2322 = vpack.c.b16 %v2306, %v2305
        %v2323 = vpack.c.b16 %v2308, %v2307
        %v2325 = vshrl.u32 %v2309, 16
        %v2327 = vshll.u32 %v2309, 16
        %v2329 = vrot.slane %v2327, 1
        %v2330 = vor.u32 %v2325, %v2329
        %v2332 = vshrl.u32 %v2310, 16
        %v2334 = vshll.u32 %v2310, 16
        %v2336 = vrot.slane %v2334, 1
        %v2337 = vor.u32 %v2332, %v2336
        %v2339 = vshrl.u32 %v2311, 16
        %v2341 = vshll.u32 %v2311, 16
        %v2343 = vrot.slane %v2341, 1
        %v2344 = vor.u32 %v2339, %v2343
        %v2346 = vshrl.u32 %v2312, 16
        %v2348 = vshll.u32 %v2312, 16
        %v2350 = vrot.slane %v2348, 1
        %v2351 = vor.u32 %v2346, %v2350
        %v2353 = vshrl.u32 %v2313, 16
        %v2355 = vshll.u32 %v2313, 16
        %v2357 = vrot.slane %v2355, 1
        %v2358 = vor.u32 %v2353, %v2357
        %v2360 = vshrl.u32 %v2314, 16
        %v2362 = vshll.u32 %v2314, 16
        %v2364 = vrot.slane %v2362, 1
        %v2365 = vor.u32 %v2360, %v2364
        %v2367 = vshrl.u32 %v2315, 16
        %v2369 = vshll.u32 %v2315, 16
        %v2371 = vrot.slane %v2369, 1
        %v2372 = vor.u32 %v2367, %v2371
        %v2374 = vshrl.u32 %v2316, 16
        %v2376 = vshll.u32 %v2316, 16
        %v2378 = vrot.slane %v2376, 1
        %v2379 = vor.u32 %v2374, %v2378
        %v2381 = vshrl.u32 %v2317, 16
        %v2383 = vshll.u32 %v2317, 16
        %v2385 = vrot.slane %v2383, 1
        %v2386 = vor.u32 %v2381, %v2385
        %v2388 = vshrl.u32 %v2318, 16
        %v2390 = vshll.u32 %v2318, 16
        %v2392 = vrot.slane %v2390, 1
        %v2393 = vor.u32 %v2388, %v2392
        %v2395 = vshrl.u32 %v2319, 16
        %v2397 = vshll.u32 %v2319, 16
        %v2399 = vrot.slane %v2397, 1
        %v2400 = vor.u32 %v2395, %v2399
        %v2402 = vshrl.u32 %v2320, 16
        %v2404 = vshll.u32 %v2320, 16
        %v2406 = vrot.slane %v2404, 1
        %v2407 = vor.u32 %v2402, %v2406
        %v2409 = vshrl.u32 %v2321, 16
        %v2411 = vshll.u32 %v2321, 16
        %v2413 = vrot.slane %v2411, 1
        %v2414 = vor.u32 %v2409, %v2413
        %v2416 = vshrl.u32 %v2322, 16
        %v2418 = vshll.u32 %v2322, 16
        %v2420 = vrot.slane %v2418, 1
        %v2421 = vor.u32 %v2416, %v2420
        %v2423 = vshrl.u32 %v2323, 16
        %v2425 = vshll.u32 %v2323, 16
        %v2427 = vrot.slane %v2425, 1
        %v2428 = vor.u32 %v2423, %v2427
        %2429 = vrot.lane.b32.xlu0 %v2330, 32
        %v2430 = vpop.permute.xlu0 %2429
        %2431 = vrot.lane.b32.xlu0 %v2337, 32
        %v2432 = vpop.permute.xlu0 %2431
        %2433 = vrot.lane.b32.xlu0 %v2344, 32
        %v2434 = vpop.permute.xlu0 %2433
        %2435 = vrot.lane.b32.xlu0 %v2351, 32
        %v2436 = vpop.permute.xlu0 %2435
        %2437 = vrot.lane.b32.xlu0 %v2358, 32
        %v2438 = vpop.permute.xlu0 %2437
        %2439 = vrot.lane.b32.xlu0 %v2365, 32
        %v2440 = vpop.permute.xlu0 %2439
        %2441 = vrot.lane.b32.xlu0 %v2372, 32
        %v2442 = vpop.permute.xlu0 %2441
        %2443 = vrot.lane.b32.xlu0 %v2379, 32
        %v2444 = vpop.permute.xlu0 %2443
        %2445 = vrot.lane.b32.xlu0 %v2386, 32
        %v2446 = vpop.permute.xlu0 %2445
        %2447 = vrot.lane.b32.xlu0 %v2393, 32
        %v2448 = vpop.permute.xlu0 %2447
        %2449 = vrot.lane.b32.xlu0 %v2400, 32
        %v2450 = vpop.permute.xlu0 %2449
        %2451 = vrot.lane.b32.xlu0 %v2407, 32
        %v2452 = vpop.permute.xlu0 %2451
        %2453 = vrot.lane.b32.xlu0 %v2414, 32
        %v2454 = vpop.permute.xlu0 %2453
        %2455 = vrot.lane.b32.xlu0 %v2421, 32
        %v2456 = vpop.permute.xlu0 %2455
        %2457 = vrot.lane.b32.xlu0 %v2428, 32
        %v2458 = vpop.permute.xlu0 %2457
        %vm2474 = vcmask 294144
        %vm2475 = vmand %vm2474, %vm882
        %v2476 = vld [vmem:[#allocation2] sm:$0xff]
        %v2477 = vsel %vm2475, %v2430, %v2476
        %2478 = vst [vmem:[#allocation2] sm:$0xff] %v2477
        %v2479 = vld [vmem:[#allocation2 + $0x8] sm:$0xff]
        %v2480 = vsel %vm2475, %v2432, %v2479
        %2481 = vst [vmem:[#allocation2 + $0x8] sm:$0xff] %v2480
        %v2482 = vld [vmem:[#allocation2 + $0x10] sm:$0xff]
        %v2483 = vsel %vm2475, %v2434, %v2482
        %2484 = vst [vmem:[#allocation2 + $0x10] sm:$0xff] %v2483
        %v2485 = vld [vmem:[#allocation2 + $0x18] sm:$0xff]
        %v2486 = vsel %vm2475, %v2436, %v2485
        %2487 = vst [vmem:[#allocation2 + $0x18] sm:$0xff] %v2486
        %v2488 = vld [vmem:[#allocation2 + $0x20] sm:$0xff]
        %v2489 = vsel %vm2475, %v2438, %v2488
        %2490 = vst [vmem:[#allocation2 + $0x20] sm:$0xff] %v2489
        %v2491 = vld [vmem:[#allocation2 + $0x28] sm:$0xff]
        %v2492 = vsel %vm2475, %v2440, %v2491
        %2493 = vst [vmem:[#allocation2 + $0x28] sm:$0xff] %v2492
        %v2494 = vld [vmem:[#allocation2 + $0x30] sm:$0xff]
        %v2495 = vsel %vm2475, %v2442, %v2494
        %2496 = vst [vmem:[#allocation2 + $0x30] sm:$0xff] %v2495
        %v2497 = vld [vmem:[#allocation2 + $0x38] sm:$0xff]
        %v2498 = vsel %vm2475, %v2444, %v2497
        %2499 = vst [vmem:[#allocation2 + $0x38] sm:$0xff] %v2498
        %v2500 = vld [vmem:[#allocation2 + $0x40] sm:$0xff]
        %v2501 = vsel %vm2475, %v2446, %v2500
        %2502 = vst [vmem:[#allocation2 + $0x40] sm:$0xff] %v2501
        %v2503 = vld [vmem:[#allocation2 + $0x48] sm:$0xff]
        %v2504 = vsel %vm2475, %v2448, %v2503
        %2505 = vst [vmem:[#allocation2 + $0x48] sm:$0xff] %v2504
        %v2506 = vld [vmem:[#allocation2 + $0x50] sm:$0xff]
        %v2507 = vsel %vm2475, %v2450, %v2506
        %2508 = vst [vmem:[#allocation2 + $0x50] sm:$0xff] %v2507
        %v2509 = vld [vmem:[#allocation2 + $0x58] sm:$0xff]
        %v2510 = vsel %vm2475, %v2452, %v2509
        %2511 = vst [vmem:[#allocation2 + $0x58] sm:$0xff] %v2510
        %v2512 = vld [vmem:[#allocation2 + $0x60] sm:$0xff]
        %v2513 = vsel %vm2475, %v2454, %v2512
        %2514 = vst [vmem:[#allocation2 + $0x60] sm:$0xff] %v2513
        %v2515 = vld [vmem:[#allocation2 + $0x68] sm:$0xff]
        %v2516 = vsel %vm2475, %v2456, %v2515
        %2517 = vst [vmem:[#allocation2 + $0x68] sm:$0xff] %v2516
        %v2518 = vld [vmem:[#allocation2 + $0x70] sm:$0xff]
        %v2519 = vsel %vm2475, %v2458, %v2518
        %2520 = vst [vmem:[#allocation2 + $0x70] sm:$0xff] %v2519
        %v2521 = vld [vmem:[#allocation2] sm:$0xff]
        %v2522 = vld [vmem:[#allocation2 + $0x8] sm:$0xff]
        %v2523 = vld [vmem:[#allocation2 + $0x10] sm:$0xff]
        %v2524 = vld [vmem:[#allocation2 + $0x18] sm:$0xff]
        %v2525 = vld [vmem:[#allocation2 + $0x20] sm:$0xff]
        %v2526 = vld [vmem:[#allocation2 + $0x28] sm:$0xff]
        %v2527 = vld [vmem:[#allocation2 + $0x30] sm:$0xff]
        %v2528 = vld [vmem:[#allocation2 + $0x38] sm:$0xff]
        %v2529 = vld [vmem:[#allocation2 + $0x40] sm:$0xff]
        %v2530 = vld [vmem:[#allocation2 + $0x48] sm:$0xff]
        %v2531 = vld [vmem:[#allocation2 + $0x50] sm:$0xff]
        %v2532 = vld [vmem:[#allocation2 + $0x58] sm:$0xff]
        %v2533 = vld [vmem:[#allocation2 + $0x60] sm:$0xff]
        %v2534 = vld [vmem:[#allocation2 + $0x68] sm:$0xff]
        %v2535 = vld [vmem:[#allocation2 + $0x70] sm:$0xff]
        %v2536 = vld [vmem:[#allocation2 + $0x78] sm:$0xff]
        %v2537 = vld [vmem:[%s1] sm:$0xf]
        %v2538 = vld [vmem:[%s1 + $0x4] sm:$0xf]
        %v2539 = vld [vmem:[%s1 + $0x8] sm:$0xf]
        %v2540 = vld [vmem:[%s1 + $0xc] sm:$0xf]
        %v2541 = vld [vmem:[%s1 + $0x10] sm:$0xf]
        %v2542 = vld [vmem:[%s1 + $0x14] sm:$0xf]
        %v2543 = vld [vmem:[%s1 + $0x18] sm:$0xf]
        %v2544 = vld [vmem:[%s1 + $0x1c] sm:$0xf]
        %v2545 = vld [vmem:[%s1 + $0x20] sm:$0xf]
        %v2546 = vld [vmem:[%s1 + $0x24] sm:$0xf]
        %v2547 = vld [vmem:[%s1 + $0x28] sm:$0xf]
        %v2548 = vld [vmem:[%s1 + $0x2c] sm:$0xf]
        %v2549 = vld [vmem:[%s1 + $0x30] sm:$0xf]
        %v2550 = vld [vmem:[%s1 + $0x34] sm:$0xf]
        %v2551 = vld [vmem:[%s1 + $0x38] sm:$0xf]
        %v2552 = vld [vmem:[%s1 + $0x3c] sm:$0xf]
        %v2553 = vld [vmem:[%s2] sm:$0x1]
        %v2555 = vlaneseq
        %v2556 = vshrl.u32 %v2555, 7
        %v2557 = vsub.s32 0, %v2556
        %v2558 = vrot.slane %v2553, %v2557
        %v2576 = vunpack.c.l.b16 %v2537
        %v2577 = vunpack.c.l.b16 %v2538
        %v2578 = vunpack.c.l.b16 %v2539
        %v2579 = vunpack.c.l.b16 %v2540
        %v2580 = vunpack.c.l.b16 %v2541
        %v2581 = vunpack.c.l.b16 %v2542
        %v2582 = vunpack.c.l.b16 %v2543
        %v2583 = vunpack.c.l.b16 %v2544
        %v2584 = vunpack.c.l.b16 %v2545
        %v2585 = vunpack.c.l.b16 %v2546
        %v2586 = vunpack.c.l.b16 %v2547
        %v2587 = vunpack.c.l.b16 %v2548
        %v2588 = vunpack.c.l.b16 %v2549
        %v2589 = vunpack.c.l.b16 %v2550
        %v2590 = vunpack.c.l.b16 %v2551
        %v2591 = vunpack.c.l.b16 %v2552
        %v2592 = vpack.c.b16 %v2577, %v2576
        %v2593 = vpack.c.b16 %v2579, %v2578
        %v2594 = vpack.c.b16 %v2581, %v2580
        %v2595 = vpack.c.b16 %v2583, %v2582
        %v2596 = vpack.c.b16 %v2585, %v2584
        %v2597 = vpack.c.b16 %v2587, %v2586
        %v2598 = vpack.c.b16 %v2589, %v2588
        %v2599 = vpack.c.b16 %v2591, %v2590
        %2608 = vmatprep.subr.bf16.mxu0 0
        %2609 = vmatpush1.bf16.msra.mxu0 %v2592
        %2610 = vmatprep.subr.bf16.mxu0 0
        %2611 = vmatpush1.bf16.msra.mxu0 %v2593
        %2612 = vmatprep.subr.bf16.mxu0 0
        %2613 = vmatpush1.bf16.msra.mxu0 %v2594
        %2614 = vmatprep.subr.bf16.mxu0 0
        %2615 = vmatpush1.bf16.msra.mxu0 %v2595
        %2616 = vmatprep.subr.bf16.mxu0 0
        %2617 = vmatpush1.bf16.msra.mxu0 %v2596
        %2618 = vmatprep.subr.bf16.mxu0 0
        %2619 = vmatpush1.bf16.msra.mxu0 %v2597
        %2620 = vmatprep.subr.bf16.mxu0 0
        %2621 = vmatpush1.bf16.msra.mxu0 %v2598
        %2622 = vmatprep.subr.bf16.mxu0 0
        %2623 = vmatpush1.bf16.msra.mxu0 %v2599
        %2624 = vmatprep.subr.bf16.mxu0 0
        %2625 = vmatpush1.bf16.msra.mxu0 0
        %2626 = vmatprep.subr.bf16.mxu0 0
        %2627 = vmatpush1.bf16.msra.mxu0 0
        %2628 = vmatprep.subr.bf16.mxu0 0
        %2629 = vmatpush1.bf16.msra.mxu0 0
        %2630 = vmatprep.subr.bf16.mxu0 0
        %2631 = vmatpush1.bf16.msra.mxu0 0
        %2632 = vmatprep.subr.bf16.mxu0 0
        %2633 = vmatpush1.bf16.msra.mxu0 0
        %2634 = vmatprep.subr.bf16.mxu0 0
        %2635 = vmatpush1.bf16.msra.mxu0 0
        %2636 = vmatprep.subr.bf16.mxu0 0
        %2637 = vmatpush1.bf16.msra.mxu0 0
        %2638 = vmatprep.subr.bf16.mxu0 0
        %2639 = vmatpush1.bf16.msra.mxu0 0
        %2640 = vmatprep.mubr.bf16.mxu0 0
        %2641 = vmatmul.mubr.bf16.gmra.mrb[0].mxu0 %v2521
        %v2642 = vpop.f32.mrb[0].mxu0
        %v2643 = vadd.f32 %v2558, %v2642
        %v2644 = vpop.f32.mrb[0].mxu0
        %v2645 = vpop.f32.mrb[0].mxu0
        %v2646 = vadd.f32 %v2558, %v2645
        %v2647 = vpop.f32.mrb[0].mxu0
        %2648 = vmatprep.mubr.bf16.mxu0 0
        %2649 = vmatmul.mubr.bf16.gmra.mrb[0].mxu0 %v2522
        %v2650 = vpop.f32.mrb[0].mxu0
        %v2651 = vadd.f32 %v2558, %v2650
        %v2652 = vpop.f32.mrb[0].mxu0
        %v2653 = vpop.f32.mrb[0].mxu0
        %v2654 = vadd.f32 %v2558, %v2653
        %v2655 = vpop.f32.mrb[0].mxu0
        %2656 = vmatprep.mubr.bf16.mxu0 0
        %2657 = vmatmul.mubr.bf16.gmra.mrb[0].mxu0 %v2523
        %v2658 = vpop.f32.mrb[0].mxu0
        %v2659 = vadd.f32 %v2558, %v2658
        %v2660 = vpop.f32.mrb[0].mxu0
        %v2661 = vpop.f32.mrb[0].mxu0
        %v2662 = vadd.f32 %v2558, %v2661
        %v2663 = vpop.f32.mrb[0].mxu0
        %2664 = vmatprep.mubr.bf16.mxu0 0
        %2665 = vmatmul.mubr.bf16.gmra.mrb[0].mxu0 %v2524
        %v2666 = vpop.f32.mrb[0].mxu0
        %v2667 = vadd.f32 %v2558, %v2666
        %v2668 = vpop.f32.mrb[0].mxu0
        %v2669 = vpop.f32.mrb[0].mxu0
        %v2670 = vadd.f32 %v2558, %v2669
        %v2671 = vpop.f32.mrb[0].mxu0
        %2672 = vmatprep.mubr.bf16.mxu0 0
        %2673 = vmatmul.mubr.bf16.gmra.mrb[0].mxu0 %v2525
        %v2674 = vpop.f32.mrb[0].mxu0
        %v2675 = vadd.f32 %v2558, %v2674
        %v2676 = vpop.f32.mrb[0].mxu0
        %v2677 = vpop.f32.mrb[0].mxu0
        %v2678 = vadd.f32 %v2558, %v2677
        %v2679 = vpop.f32.mrb[0].mxu0
        %2680 = vmatprep.mubr.bf16.mxu0 0
        %2681 = vmatmul.mubr.bf16.gmra.mrb[0].mxu0 %v2526
        %v2682 = vpop.f32.mrb[0].mxu0
        %v2683 = vadd.f32 %v2558, %v2682
        %v2684 = vpop.f32.mrb[0].mxu0
        %v2685 = vpop.f32.mrb[0].mxu0
        %v2686 = vadd.f32 %v2558, %v2685
        %v2687 = vpop.f32.mrb[0].mxu0
        %2688 = vmatprep.mubr.bf16.mxu0 0
        %2689 = vmatmul.mubr.bf16.gmra.mrb[0].mxu0 %v2527
        %v2690 = vpop.f32.mrb[0].mxu0
        %v2691 = vadd.f32 %v2558, %v2690
        %v2692 = vpop.f32.mrb[0].mxu0
        %v2693 = vpop.f32.mrb[0].mxu0
        %v2694 = vadd.f32 %v2558, %v2693
        %v2695 = vpop.f32.mrb[0].mxu0
        %2696 = vmatprep.mubr.bf16.mxu0 0
        %2697 = vmatmul.mubr.bf16.gmra.mrb[0].mxu0 %v2528
        %v2698 = vpop.f32.mrb[0].mxu0
        %v2699 = vadd.f32 %v2558, %v2698
        %v2700 = vpop.f32.mrb[0].mxu0
        %v2701 = vpop.f32.mrb[0].mxu0
        %v2702 = vadd.f32 %v2558, %v2701
        %v2703 = vpop.f32.mrb[0].mxu0
        %2704 = vmatprep.mubr.bf16.mxu0 0
        %2705 = vmatmul.mubr.bf16.gmra.mrb[0].mxu0 %v2529
        %v2706 = vpop.f32.mrb[0].mxu0
        %v2707 = vadd.f32 %v2558, %v2706
        %v2708 = vpop.f32.mrb[0].mxu0
        %v2709 = vpop.f32.mrb[0].mxu0
        %v2710 = vadd.f32 %v2558, %v2709
        %v2711 = vpop.f32.mrb[0].mxu0
        %2712 = vmatprep.mubr.bf16.mxu0 0
        %2713 = vmatmul.mubr.bf16.gmra.mrb[0].mxu0 %v2530
        %v2714 = vpop.f32.mrb[0].mxu0
        %v2715 = vadd.f32 %v2558, %v2714
        %v2716 = vpop.f32.mrb[0].mxu0
        %v2717 = vpop.f32.mrb[0].mxu0
        %v2718 = vadd.f32 %v2558, %v2717
        %v2719 = vpop.f32.mrb[0].mxu0
        %2720 = vmatprep.mubr.bf16.mxu0 0
        %2721 = vmatmul.mubr.bf16.gmra.mrb[0].mxu0 %v2531
        %v2722 = vpop.f32.mrb[0].mxu0
        %v2723 = vadd.f32 %v2558, %v2722
        %v2724 = vpop.f32.mrb[0].mxu0
        %v2725 = vpop.f32.mrb[0].mxu0
        %v2726 = vadd.f32 %v2558, %v2725
        %v2727 = vpop.f32.mrb[0].mxu0
        %2728 = vmatprep.mubr.bf16.mxu0 0
        %2729 = vmatmul.mubr.bf16.gmra.mrb[0].mxu0 %v2532
        %v2730 = vpop.f32.mrb[0].mxu0
        %v2731 = vadd.f32 %v2558, %v2730
        %v2732 = vpop.f32.mrb[0].mxu0
        %v2733 = vpop.f32.mrb[0].mxu0
        %v2734 = vadd.f32 %v2558, %v2733
        %v2735 = vpop.f32.mrb[0].mxu0
        %2736 = vmatprep.mubr.bf16.mxu0 0
        %2737 = vmatmul.mubr.bf16.gmra.mrb[0].mxu0 %v2533
        %v2738 = vpop.f32.mrb[0].mxu0
        %v2739 = vadd.f32 %v2558, %v2738
        %v2740 = vpop.f32.mrb[0].mxu0
        %v2741 = vpop.f32.mrb[0].mxu0
        %v2742 = vadd.f32 %v2558, %v2741
        %v2743 = vpop.f32.mrb[0].mxu0
        %2744 = vmatprep.mubr.bf16.mxu0 0
        %2745 = vmatmul.mubr.bf16.gmra.mrb[0].mxu0 %v2534
        %v2746 = vpop.f32.mrb[0].mxu0
        %v2747 = vadd.f32 %v2558, %v2746
        %v2748 = vpop.f32.mrb[0].mxu0
        %v2749 = vpop.f32.mrb[0].mxu0
        %v2750 = vadd.f32 %v2558, %v2749
        %v2751 = vpop.f32.mrb[0].mxu0
        %2752 = vmatprep.mubr.bf16.mxu0 0
        %2753 = vmatmul.mubr.bf16.gmra.mrb[0].mxu0 %v2535
        %v2754 = vpop.f32.mrb[0].mxu0
        %v2755 = vadd.f32 %v2558, %v2754
        %v2756 = vpop.f32.mrb[0].mxu0
        %v2757 = vpop.f32.mrb[0].mxu0
        %v2758 = vadd.f32 %v2558, %v2757
        %v2759 = vpop.f32.mrb[0].mxu0
        %2760 = vmatprep.mubr.bf16.mxu0 0
        %2761 = vmatmul.mubr.bf16.gmra.mrb[0].mxu0 %v2536
        %v2762 = vpop.f32.mrb[0].mxu0
        %v2763 = vadd.f32 %v2558, %v2762
        %v2764 = vpop.f32.mrb[0].mxu0
        %v2765 = vpop.f32.mrb[0].mxu0
        %v2766 = vadd.f32 %v2558, %v2765
        %v2767 = vpop.f32.mrb[0].mxu0
        %2768 = vdwg.mxu0
        %2769 = vst [vmem:[%s163] sm:$0xff] %v2643
        %2770 = vst [vmem:[%s163 + $0x8] sm:$0xff] %v2646
        %2771 = vst [vmem:[%s163 + $0x10] sm:$0xff] %v2651
        %2772 = vst [vmem:[%s163 + $0x18] sm:$0xff] %v2654
        %2773 = vst [vmem:[%s163 + $0x20] sm:$0xff] %v2659
        %2774 = vst [vmem:[%s163 + $0x28] sm:$0xff] %v2662
        %2775 = vst [vmem:[%s163 + $0x30] sm:$0xff] %v2667
        %2776 = vst [vmem:[%s163 + $0x38] sm:$0xff] %v2670
        %2777 = vst [vmem:[%s163 + $0x40] sm:$0xff] %v2675
        %2778 = vst [vmem:[%s163 + $0x48] sm:$0xff] %v2678
        %2779 = vst [vmem:[%s163 + $0x50] sm:$0xff] %v2683
        %2780 = vst [vmem:[%s163 + $0x58] sm:$0xff] %v2686
        %2781 = vst [vmem:[%s163 + $0x60] sm:$0xff] %v2691
        %2782 = vst [vmem:[%s163 + $0x68] sm:$0xff] %v2694
        %2783 = vst [vmem:[%s163 + $0x70] sm:$0xff] %v2699
        %2784 = vst [vmem:[%s163 + $0x78] sm:$0xff] %v2702
        %2785 = vst [vmem:[%s163 + $0x80] sm:$0xff] %v2707
        %2786 = vst [vmem:[%s163 + $0x88] sm:$0xff] %v2710
        %2787 = vst [vmem:[%s163 + $0x90] sm:$0xff] %v2715
        %2788 = vst [vmem:[%s163 + $0x98] sm:$0xff] %v2718
        %2789 = vst [vmem:[%s163 + $0xa0] sm:$0xff] %v2723
        %2790 = vst [vmem:[%s163 + $0xa8] sm:$0xff] %v2726
        %2791 = vst [vmem:[%s163 + $0xb0] sm:$0xff] %v2731
        %2792 = vst [vmem:[%s163 + $0xb8] sm:$0xff] %v2734
        %2793 = vst [vmem:[%s163 + $0xc0] sm:$0xff] %v2739
        %2794 = vst [vmem:[%s163 + $0xc8] sm:$0xff] %v2742
        %2795 = vst [vmem:[%s163 + $0xd0] sm:$0xff] %v2747
        %2796 = vst [vmem:[%s163 + $0xd8] sm:$0xff] %v2750
        %2797 = vst [vmem:[%s163 + $0xe0] sm:$0xff] %v2755
        %2798 = vst [vmem:[%s163 + $0xe8] sm:$0xff] %v2758
        %2799 = vst [vmem:[%s163 + $0xf0] sm:$0xff] %v2763
        %2800 = vst [vmem:[%s163 + $0xf8] sm:$0xff] %v2766
        %s2801 = sand.u32 %s93, 1
        %s2802 = scalar_lea.sflag [#allocation4], %s2801
        %s2803 = sand.u32 %s93, 1
        %s2804 = smul.addr %s2803, 256
        %s2805 = scalar_lea.vmem [#allocation3], %s2804
        // Predicated region
        $region33: #{tpu_custom_call.1} parent=31 // pred_check
          %p2806 = pneg %p103
        $region34: #{tpu_custom_call.1} parent=31 // pred_check_branch
          %2808 = sbr.rel (%p2806) target = $region36
        $region35: #{tpu_custom_call.1} parent=31 // pred_region
          %s2810 = ssub.s32 4096, 4096
          %2811 = vsyncadd %s2802, %s2810
          %s2812 = smul.addr %s17, 32
          %s2813 = smul.addr %s2812, 128
          %s2814 = scalar_lea.hbm %s3, %s2813
          %s2815 = sshll.u32 %s2805, 4
          %s2816 = int_to_ptr.vmem [resolvable:$true] %s2815
          %2821 = dma.vmem_to_hbm [thread:$0]  %s2816, 4096, %s2814, %s2802, 128, 128, 8
        $region36: #{tpu_custom_call.1} parent=31 // pred_fallthru
          _
      $region32: #{tpu_custom_call.1} parent=5 // pred_fallthru
        _
      %p2822 = scmp.le.s32.totalorder 2, %s12
      // Predicated region
      $region37: #{tpu_custom_call.1} parent=5 // pred_check
        %p2823 = pneg %p2822
      $region38: #{tpu_custom_call.1} parent=5 // pred_check_branch
        %2825 = sbr.rel (%p2823) target = $region40
      $region39: #{tpu_custom_call.1} parent=5 // pred_region
        %s2826 = ssub.s32 %s12, 2
        // Predicated region
        $region41: #{tpu_custom_call.1} parent=39 // pred_check
          %p2827 = pneg %p109
        $region42: #{tpu_custom_call.1} parent=39 // pred_check_branch
          %2829 = sbr.rel (%p2827) target = $region44
        $region43: #{tpu_custom_call.1} parent=39 // pred_region
          %s2830 = sand.u32 %s94, 1
          %s2831 = scalar_lea.sflag [#allocation4], %s2830
          %s2832 = sand.u32 %s94, 1
          %s2833 = smul.addr %s2832, 256
          %s2834 = scalar_lea.vmem [#allocation3], %s2833
          %2835 = dma.done %s2831, 4096
        $region44: #{tpu_custom_call.1} parent=39 // pred_fallthru
          _
      $region40: #{tpu_custom_call.1} parent=5 // pred_fallthru
        _
    $region6: #{tpu_custom_call.1} parent=1 // loop_footer
      %s16 = sadd.s32 1, %s12
    $region7: #{tpu_custom_call.1} parent=1 // loop_footer_branch
      %11 = sbr.rel target = $region3
    $region8: #{tpu_custom_call.1} parent=1 // loop_exit
      _
    %2836 = vsyncpa [#allocation4], 1
    %s2837 = scalar_lea.sflag [#allocation4], 1
    %2838 = vsyncpa %s2837, 1

</llo_original>
